<compile_context>
chip_gen: v7x
topology: tpu7x:2x2x1
jax: 0.10.0
libtpu: 0.0.40
codegen_flags: <defaults>
</compile_context>

<pallas_src>
import functools
import math

import jax
import jax.numpy as jnp
from jax.experimental import pallas as pl
from jax.experimental.pallas import tpu as pltpu


def _flash_attn_kernel(q_ref, k_ref, v_ref, o_ref,
                       m_scr, l_scr, acc_scr, *,
                       scale, lk_actual, block_k, compute_dtype):
    # Block shapes: q (1, TQ, Dp), k (1, TK, Dp), v (1, TK, DVp), o (1, TQ, DVp).
    kv = pl.program_id(2)

    @pl.when(kv == 0)
    def _init():
        m_scr[...] = jnp.full_like(m_scr, -jnp.inf)
        l_scr[...] = jnp.zeros_like(l_scr)
        acc_scr[...] = jnp.zeros_like(acc_scr)

    # Scale Q (Lq*D elems, not Lq*Lk scores); cast only at the MXU inputs.
    q = (q_ref[0] * scale).astype(compute_dtype)          # (TQ, Dp)
    k = k_ref[0].astype(compute_dtype)                     # (TK, Dp)

    # scores = Q @ K^T, contracting the last dims directly (no XLU transpose of K).
    s = jax.lax.dot_general(
        q, k,
        dimension_numbers=(((1,), (1,)), ((), ())),
        preferred_element_type=jnp.float32)                # (TQ, TK) f32

    # Mask padded key positions (only emitted when Lk isn't tile-aligned).
    if lk_actual % block_k != 0:
        col = kv * block_k + jax.lax.broadcasted_iota(jnp.int32, s.shape, 1)
        s = jnp.where(col < lk_actual, s, -1e30)

    # Online (flash) softmax update, all statistics in f32.
    m_prev = m_scr[...]                                    # (TQ, 1)
    m_new = jnp.maximum(m_prev, jnp.max(s, axis=-1, keepdims=True))
    alpha = jnp.exp(m_prev - m_new)                        # EUP
    p = jnp.exp(s - m_new)                                 # (TQ, TK) f32

    l_scr[...] = alpha * l_scr[...] + jnp.sum(p, axis=-1, keepdims=True)
    acc_scr[...] = alpha * acc_scr[...] + jax.lax.dot_general(
        p.astype(compute_dtype), v_ref[0].astype(compute_dtype),
        dimension_numbers=(((1,), (0,)), ((), ())),
        preferred_element_type=jnp.float32)                # (TQ, DVp)
    m_scr[...] = m_new

    @pl.when(kv == pl.num_programs(2) - 1)
    def _finalize():
        inv_l = pl.reciprocal(l_scr[...], approx=True)     # EUP vrcp
        o_ref[0] = (acc_scr[...] * inv_l).astype(o_ref.dtype)


def dot_product_attention(queries, keys, values, *,
                          block_q=128, block_k=128, compute_dtype=None):
    """queries: [B, Lq, D], keys: [B, Lk, D], values: [B, Lk, Dv] -> [B, Lq, Dv]."""
    B, Lq, D = queries.shape
    Bk, Lk, Dk = keys.shape
    Bv, Lkv, Dv = values.shape
    assert B == Bk == Bv and D == Dk and Lk == Lkv

    if compute_dtype is None:
        compute_dtype = queries.dtype

    def _rup(x, m):
        return ((x + m - 1) // m) * m

    # Pad to lane-dense (multiple-of-128 last dims) and tile-aligned shapes.
    # Zero padding on D/Dv/Lq is exact; padded Lk positions are masked in-kernel.
    lq_p = _rup(Lq, block_q)
    lk_p = _rup(Lk, block_k)
    d_p = _rup(D, 128)
    dv_p = _rup(Dv, 128)

    q_p = jnp.pad(queries, ((0, 0), (0, lq_p - Lq), (0, d_p - D)))
    k_p = jnp.pad(keys, ((0, 0), (0, lk_p - Lk), (0, d_p - D)))
    v_p = jnp.pad(values, ((0, 0), (0, lk_p - Lk), (0, dv_p - Dv)))

    scale = 1.0 / math.sqrt(D)
    grid = (B, lq_p // block_q, lk_p // block_k)

    kernel = functools.partial(
        _flash_attn_kernel,
        scale=scale,
        lk_actual=Lk,
        block_k=block_k,
        compute_dtype=compute_dtype,
    )

    out_p = pl.pallas_call(
        kernel,
        out_shape=jax.ShapeDtypeStruct((B, lq_p, dv_p), queries.dtype),
        grid_spec=pltpu.PrefetchScalarGridSpec(
            num_scalar_prefetch=0,
            grid=grid,
            in_specs=[
                pl.BlockSpec((1, block_q, d_p), lambda b, qi, ki: (b, qi, 0)),
                pl.BlockSpec((1, block_k, d_p), lambda b, qi, ki: (b, ki, 0)),
                pl.BlockSpec((1, block_k, dv_p), lambda b, qi, ki: (b, ki, 0)),
            ],
            # Output block index is independent of ki -> accumulator stays
            # resident across the reduction axis, written once at finalize.
            out_specs=pl.BlockSpec((1, block_q, dv_p), lambda b, qi, ki: (b, qi, 0)),
            scratch_shapes=[
                pltpu.VMEM((block_q, 1), jnp.float32),      # m_i
                pltpu.VMEM((block_q, 1), jnp.float32),      # l_i
                pltpu.VMEM((block_q, dv_p), jnp.float32),   # acc
            ],
        ),
        compiler_params=pltpu.CompilerParams(
            dimension_semantics=("parallel", "parallel", "arbitrary"),
        ),
    )(q_p, k_p, v_p)

    return out_p[:, :Lq, :Dv]


def _reference(queries, keys, values):
    d = queries.shape[-1]
    scores = jnp.einsum("bqd,bkd->bqk", queries, keys) / math.sqrt(d)
    w = jax.nn.softmax(scores, axis=-1)
    return jnp.einsum("bqk,bkv->bqv", w, values)


if __name__ == "__main__":
    key = jax.random.PRNGKey(0)
    kq, kk, kv_key = jax.random.split(key, 3)

    # 1) Small, module-consistent shapes (exercises the padding + key-mask path).
    B, Lq, Lk, D, Dv = 2, 8, 8, 32, 32
    queries = jax.random.normal(kq, (B, Lq, D), dtype=jnp.float32)
    keys = jax.random.normal(kk, (B, Lk, D), dtype=jnp.float32)
    values = jax.random.normal(kv_key, (B, Lk, Dv), dtype=jnp.float32)

    out = jax.block_until_ready(dot_product_attention(queries, keys, values))
    ref = _reference(queries, keys, values)
    assert out.shape == (B, Lq, Dv)
    assert jnp.allclose(out, ref, atol=5e-3, rtol=5e-3), \
        float(jnp.max(jnp.abs(out - ref)))

    # 2) Lane-dense, tile-aligned shapes with bf16 MXU operands (f32 accumulation).
    B2, L2, D2 = 2, 256, 128
    q2 = jax.random.normal(kq, (B2, L2, D2), dtype=jnp.float32)
    k2 = jax.random.normal(kk, (B2, L2, D2), dtype=jnp.float32)
    v2 = jax.random.normal(kv_key, (B2, L2, D2), dtype=jnp.float32)
    out2 = jax.block_until_ready(
        dot_product_attention(q2, k2, v2, compute_dtype=jnp.bfloat16))
    ref2 = _reference(q2, k2, v2)
    assert out2.shape == (B2, L2, D2)
    assert float(jnp.max(jnp.abs(out2 - ref2))) < 5e-2

    print("KERNEL_OK")
</pallas_src>

<mosaic_0001>
module attributes {stable_mosaic.version = 11 : i64} {
  func.func @_flash_attn_kernel(%arg0: i32, %arg1: i32, %arg2: i32, %arg3: memref<1x128x128xf32, #tpu.memory_space<vmem>>, %arg4: memref<1x128x128xf32, #tpu.memory_space<vmem>>, %arg5: memref<1x128x128xf32, #tpu.memory_space<vmem>>, %arg6: memref<1x128x128xf32, #tpu.memory_space<vmem>>, %arg7: memref<128x1xf32, #tpu.memory_space<vmem>>, %arg8: memref<128x1xf32, #tpu.memory_space<vmem>>, %arg9: memref<128x128xf32, #tpu.memory_space<vmem>>) attributes {dimension_semantics = [#tpu.dimension_semantics<parallel>, #tpu.dimension_semantics<parallel>, #tpu.dimension_semantics<arbitrary>], iteration_bounds = array<i64: 2, 1, 1>, scalar_prefetch = 0 : i64, scratch_operands = 3 : i64, tpu.core_type = #tpu.core_type<tc>, window_params = [{transform_indices = @transform_0, window_bounds = array<i64: 1, 128, 128>}, {transform_indices = @transform_1, window_bounds = array<i64: 1, 128, 128>}, {transform_indices = @transform_2, window_bounds = array<i64: 1, 128, 128>}, {transform_indices = @transform_3, window_bounds = array<i64: 1, 128, 128>}]} {
    %c0_i32 = arith.constant 0 : i32
    %0 = arith.cmpi eq, %arg2, %c0_i32 : i32
    %1 = arith.extui %0 : i1 to i32
    %c0_i32_0 = arith.constant 0 : i32
    %2 = arith.cmpi ne, %1, %c0_i32_0 : i32
    scf.if %2 {
      %cst_28 = arith.constant 0xFF800000 : f32
      %45 = vector.broadcast %cst_28 : f32 to vector<128x1xf32>
      %c0_29 = arith.constant 0 : index
      %c0_30 = arith.constant 0 : index
      %46 = vector.load %arg7[%c0_29, %c0_30] : memref<128x1xf32, #tpu.memory_space<vmem>>, vector<128x1xf32>
      tpu.vector_store %arg7[%c0_29, %c0_30], %45 {strides = array<i32>} : memref<128x1xf32, #tpu.memory_space<vmem>>, vector<128x1xf32>,
      %cst_31 = arith.constant 0.000000e+00 : f32
      %47 = vector.broadcast %cst_31 : f32 to vector<128x1xf32>
      %c0_32 = arith.constant 0 : index
      %c0_33 = arith.constant 0 : index
      %48 = vector.load %arg8[%c0_32, %c0_33] : memref<128x1xf32, #tpu.memory_space<vmem>>, vector<128x1xf32>
      tpu.vector_store %arg8[%c0_32, %c0_33], %47 {strides = array<i32>} : memref<128x1xf32, #tpu.memory_space<vmem>>, vector<128x1xf32>,
      %cst_34 = arith.constant 0.000000e+00 : f32
      %49 = vector.broadcast %cst_34 : f32 to vector<128x128xf32>
      %c0_35 = arith.constant 0 : index
      %c0_36 = arith.constant 0 : index
      %50 = vector.load %arg9[%c0_35, %c0_36] : memref<128x128xf32, #tpu.memory_space<vmem>>, vector<128x128xf32>
      tpu.vector_store %arg9[%c0_35, %c0_36], %49 {strides = array<i32>} : memref<128x128xf32, #tpu.memory_space<vmem>>, vector<128x128xf32>,
    } else {
    }
    %c0 = arith.constant 0 : index
    %c0_1 = arith.constant 0 : index
    %c0_2 = arith.constant 0 : index
    %3 = vector.load %arg3[%c0, %c0_1, %c0_2] : memref<1x128x128xf32, #tpu.memory_space<vmem>>, vector<1x128x128xf32>
    %4 = vector.shape_cast %3 : vector<1x128x128xf32> to vector<128x128xf32>
    %cst = arith.constant 0.176776692 : f32
    %5 = vector.broadcast %cst : f32 to vector<128x128xf32>
    %6 = arith.mulf %4, %5 : vector<128x128xf32>
    %c0_3 = arith.constant 0 : index
    %c0_4 = arith.constant 0 : index
    %c0_5 = arith.constant 0 : index
    %7 = vector.load %arg4[%c0_3, %c0_4, %c0_5] : memref<1x128x128xf32, #tpu.memory_space<vmem>>, vector<1x128x128xf32>
    %8 = vector.shape_cast %7 : vector<1x128x128xf32> to vector<128x128xf32>
    %cst_6 = arith.constant dense<0.000000e+00> : vector<128x128xf32>
    %9 = tpu.matmul %6, %8, %cst_6 {dimension_numbers = #tpu.dot_dimension_numbers<[1], [1], [0], [0], [0, 0, 1, 0], [], []>} : vector<128x128xf32>, vector<128x128xf32>, vector<128x128xf32> -> vector<128x128xf32>
    %c128_i32 = arith.constant 128 : i32
    %10 = arith.muli %arg2, %c128_i32 : i32
    %11 = tpu.iota {dimensions = array<i32: 1>} : vector<128x128xi32>
    %12 = vector.broadcast %10 : i32 to vector<128x128xi32>
    %13 = arith.addi %12, %11 : vector<128x128xi32>
    %c8_i32 = arith.constant 8 : i32
    %14 = vector.broadcast %c8_i32 : i32 to vector<128x128xi32>
    %15 = arith.cmpi slt, %13, %14 : vector<128x128xi32>
    %cst_7 = arith.constant -1.000000e+30 : f32
    %16 = vector.broadcast %cst_7 : f32 to vector<128x128xf32>
    %17 = arith.select %15, %9, %16 : vector<128x128xi1>, vector<128x128xf32>
    %c0_8 = arith.constant 0 : index
    %c0_9 = arith.constant 0 : index
    %18 = vector.load %arg7[%c0_8, %c0_9] : memref<128x1xf32, #tpu.memory_space<vmem>>, vector<128x1xf32>
    %cst_10 = arith.constant dense<0xFF800000> : vector<128xf32>
    %19 = vector.multi_reduction <maximumf>, %17, %cst_10 [1] : vector<128x128xf32> to vector<128xf32>
    %20 = vector.shape_cast %19 : vector<128xf32> to vector<128x1xf32>
    %21 = arith.maximumf %18, %20 : vector<128x1xf32>
    %22 = arith.subf %18, %21 : vector<128x1xf32>
    %23 = math.exp %22 : vector<128x1xf32>
    %24 = vector.broadcast %21 : vector<128x1xf32> to vector<128x128xf32>
    %25 = arith.subf %17, %24 : vector<128x128xf32>
    %26 = math.exp %25 : vector<128x128xf32>
    %c0_11 = arith.constant 0 : index
    %c0_12 = arith.constant 0 : index
    %27 = vector.load %arg8[%c0_11, %c0_12] : memref<128x1xf32, #tpu.memory_space<vmem>>, vector<128x1xf32>
    %28 = arith.mulf %23, %27 : vector<128x1xf32>
    %cst_13 = arith.constant dense<0.000000e+00> : vector<128xf32>
    %29 = vector.multi_reduction <add>, %26, %cst_13 [1] : vector<128x128xf32> to vector<128xf32>
    %30 = vector.shape_cast %29 : vector<128xf32> to vector<128x1xf32>
    %31 = arith.addf %28, %30 : vector<128x1xf32>
    %c0_14 = arith.constant 0 : index
    %c0_15 = arith.constant 0 : index
    %32 = vector.load %arg8[%c0_14, %c0_15] : memref<128x1xf32, #tpu.memory_space<vmem>>, vector<128x1xf32>
    tpu.vector_store %arg8[%c0_14, %c0_15], %31 {strides = array<i32>} : memref<128x1xf32, #tpu.memory_space<vmem>>, vector<128x1xf32>,
    %c0_16 = arith.constant 0 : index
    %c0_17 = arith.constant 0 : index
    %33 = vector.load %arg9[%c0_16, %c0_17] : memref<128x128xf32, #tpu.memory_space<vmem>>, vector<128x128xf32>
    %34 = vector.broadcast %23 : vector<128x1xf32> to vector<128x128xf32>
    %35 = arith.mulf %34, %33 : vector<128x128xf32>
    %c0_18 = arith.constant 0 : index
    %c0_19 = arith.constant 0 : index
    %c0_20 = arith.constant 0 : index
    %36 = vector.load %arg5[%c0_18, %c0_19, %c0_20] : memref<1x128x128xf32, #tpu.memory_space<vmem>>, vector<1x128x128xf32>
    %37 = vector.shape_cast %36 : vector<1x128x128xf32> to vector<128x128xf32>
    %cst_21 = arith.constant dense<0.000000e+00> : vector<128x128xf32>
    %38 = tpu.matmul %26, %37, %cst_21 {dimension_numbers = #tpu.dot_dimension_numbers<[1], [0], [0], [1], [0, 0, 1, 1], [], []>} : vector<128x128xf32>, vector<128x128xf32>, vector<128x128xf32> -> vector<128x128xf32>
    %39 = arith.addf %35, %38 : vector<128x128xf32>
    %c0_22 = arith.constant 0 : index
    %c0_23 = arith.constant 0 : index
    %40 = vector.load %arg9[%c0_22, %c0_23] : memref<128x128xf32, #tpu.memory_space<vmem>>, vector<128x128xf32>
    tpu.vector_store %arg9[%c0_22, %c0_23], %39 {strides = array<i32>} : memref<128x128xf32, #tpu.memory_space<vmem>>, vector<128x128xf32>,
    %c0_24 = arith.constant 0 : index
    %c0_25 = arith.constant 0 : index
    %41 = vector.load %arg7[%c0_24, %c0_25] : memref<128x1xf32, #tpu.memory_space<vmem>>, vector<128x1xf32>
    tpu.vector_store %arg7[%c0_24, %c0_25], %21 {strides = array<i32>} : memref<128x1xf32, #tpu.memory_space<vmem>>, vector<128x1xf32>,
    %c0_i32_26 = arith.constant 0 : i32
    %42 = arith.cmpi eq, %arg2, %c0_i32_26 : i32
    %43 = arith.extui %42 : i1 to i32
    %c0_i32_27 = arith.constant 0 : i32
    %44 = arith.cmpi ne, %43, %c0_i32_27 : i32
    scf.if %44 {
      %c0_28 = arith.constant 0 : index
      %c0_29 = arith.constant 0 : index
      %45 = vector.load %arg8[%c0_28, %c0_29] : memref<128x1xf32, #tpu.memory_space<vmem>>, vector<128x1xf32>
      %46 = tpu.reciprocal %45 {approx = true} : vector<128x1xf32> -> vector<128x1xf32>
      %c0_30 = arith.constant 0 : index
      %c0_31 = arith.constant 0 : index
      %47 = vector.load %arg9[%c0_30, %c0_31] : memref<128x128xf32, #tpu.memory_space<vmem>>, vector<128x128xf32>
      %48 = vector.broadcast %46 : vector<128x1xf32> to vector<128x128xf32>
      %49 = arith.mulf %47, %48 : vector<128x128xf32>
      %c0_32 = arith.constant 0 : index
      %c0_33 = arith.constant 0 : index
      %c0_34 = arith.constant 0 : index
      %50 = vector.load %arg6[%c0_32, %c0_33, %c0_34] : memref<1x128x128xf32, #tpu.memory_space<vmem>>, vector<1x128x128xf32>
      %51 = vector.shape_cast %50 : vector<1x128x128xf32> to vector<128x128xf32>
      %52 = vector.shape_cast %49 : vector<128x128xf32> to vector<1x128x128xf32>
      tpu.vector_store %arg6[%c0_32, %c0_33, %c0_34], %52 {strides = array<i32>} : memref<1x128x128xf32, #tpu.memory_space<vmem>>, vector<1x128x128xf32>,
    } else {
    }
    return
  }
  func.func @transform_0(%arg0: i32, %arg1: i32, %arg2: i32) -> (i32, i32, i32) {
    %c0_i32 = arith.constant 0 : i32
    %c0_i32_0 = arith.constant 0 : i32
    return %arg0, %arg1, %c0_i32 : i32, i32, i32
  }
  func.func @transform_1(%arg0: i32, %arg1: i32, %arg2: i32) -> (i32, i32, i32) {
    %c0_i32 = arith.constant 0 : i32
    %c0_i32_0 = arith.constant 0 : i32
    return %arg0, %arg2, %c0_i32 : i32, i32, i32
  }
  func.func @transform_2(%arg0: i32, %arg1: i32, %arg2: i32) -> (i32, i32, i32) {
    %c0_i32 = arith.constant 0 : i32
    %c0_i32_0 = arith.constant 0 : i32
    return %arg0, %arg2, %c0_i32 : i32, i32, i32
  }
  func.func @transform_3(%arg0: i32, %arg1: i32, %arg2: i32) -> (i32, i32, i32) {
    %c0_i32 = arith.constant 0 : i32
    %c0_i32_0 = arith.constant 0 : i32
    return %arg0, %arg1, %c0_i32 : i32, i32, i32
  }
}

</mosaic_0001>

<llo_original>
// kernel: tpu_custom_call.1
$region0: #{tpu_custom_call.1}
  #allocation0 [shape = 'u32[]', space=smem, size = 0x4, offset = 0x4, fixed_abs, tag = 'smem constant byte address 0x4 - core index']
  #allocation1 [shape = 'u32[144,128]{1,0:T(1,128)}', space=vmem, size = 0x12000, scoped, tag = 'internal scratch']
  #allocation2 [shape = 'f32[128,1]{1,0:T(8,128)}', space=vmem, size = 0x10000, scoped, tag = 'scratch operand']
  #allocation3 [shape = 'f32[128,1]{1,0:T(8,128)}', space=vmem, size = 0x10000, scoped, tag = 'scratch operand']
  #allocation4 [shape = 'f32[128,128]{1,0:T(8,128)}', space=vmem, size = 0x10000, scoped, tag = 'scratch operand']
  %s0 = inlined_call_operand.hbm [shape: f32[2,128,128], index: 0, kind: input, shape index: {}]
  %s1 = inlined_call_operand.hbm [shape: f32[2,128,128], index: 1, kind: input, shape index: {}]
  %s2 = inlined_call_operand.hbm [shape: f32[2,128,128], index: 2, kind: input, shape index: {}]
  %s3 = inlined_call_operand.hbm [shape: f32[2,128,128], index: 3, kind: output, shape index: {}]
  %s4 = sld [smem:[#allocation0]]
  $region65: #{tpu_custom_call.1} parent=0
    _
  %s6 = ssub.s32 1, %s4
  %s7 = scalar_select 0, %s6, %s4
  $region1: #{tpu_custom_call.1} parent=0
    #allocation5 [shape = 'u8[131072]{0}', space=vmem, size = 0x20000, scoped, tag = 'input window, operand 0']
    #allocation6 [shape = 's32[2]{0}', space=sflag, size = 0x8, scoped, tag = 'scoped memory for tpu_custom_call.1']
    #allocation7 [shape = 's32[2]{0}', space=sflag, size = 0x8, scoped, tag = 'scoped memory for tpu_custom_call.1']
    #allocation8 [shape = 'u8[131072]{0}', space=vmem, size = 0x20000, scoped, tag = 'input window, operand 1']
    #allocation9 [shape = 's32[2]{0}', space=sflag, size = 0x8, scoped, tag = 'scoped memory for tpu_custom_call.1']
    #allocation10 [shape = 'u8[131072]{0}', space=vmem, size = 0x20000, scoped, tag = 'input window, operand 2']
    #allocation11 [shape = 'u8[131072]{0}', space=vmem, size = 0x20000, scoped, tag = 'output window, operand 0']
    %8 = vsyncpa [#allocation6], 0
    %s9 = scalar_lea.sflag [#allocation6], 1
    %10 = vsyncpa %s9, 0
    %11 = vsyncpa [#allocation9], 0
    %s12 = scalar_lea.sflag [#allocation9], 1
    %13 = vsyncpa %s12, 0
    %14 = vsyncpa [#allocation7], 0
    %s15 = scalar_lea.sflag [#allocation7], 1
    %16 = vsyncpa %s15, 0
    loop: start=0, step=1, limit=4
    $region2: #{tpu_custom_call.1} parent=1 // loop_pre_header
      _
    $region3: #{tpu_custom_call.1} parent=1 // loop_header
      %s18 = sphi 0, %s22
      %p19 = scmp.ge.s32.totalorder %s18, 4
      %s25 = sphi 0, %s44
      %s26 = sphi 0, %s40
      %s27 = sphi 0, %s36
      %s28 = sphi 0, %s25
      %s29 = sphi 0, %s26
      %s30 = sphi 0, %s27
      %s31 = sphi 0, %s28
      %s32 = sphi 0, %s29
      %s33 = sphi 0, %s30
      %s49 = sphi 0, %s51
      %s52 = sphi 0, %s49
      %s53 = sphi 0, %s52
      %s69 = sphi 0, %s53
      %s77 = sphi 0, %s79
      %s80 = sphi 0, %s77
      %s81 = sphi 0, %s80
      %s97 = sphi 0, %s81
      %s105 = sphi 0, %s107
      %s108 = sphi 0, %s105
      %s109 = sphi 0, %s108
      %s125 = sphi 0, %s109
      %s133 = sphi 0, %s135
      %s136 = sphi 0, %s133
      %s137 = sphi 0, %s136
      %s153 = sphi 0, %s137
    $region4: #{tpu_custom_call.1} parent=1 // loop_header_branch
      %21 = sbr.rel (%p19) target = $region8
    $region5: #{tpu_custom_call.1} parent=1 // loop_body
      %s23 = ssub.s32 %s18, 1
      %s24 = ssub.s32 %s18, 2
      %s34 = sadd.s32 1, %s27
      %p35 = scmp.ge.s32.totalorder %s34, 1
      %s36 = scalar_select %p35, 0, %s34
      %s37 = sadd.s32 1, %s26
      %s38 = scalar_select %p35, %s37, %s26
      %p39 = scmp.ge.s32.totalorder %s38, 1
      %s40 = scalar_select %p39, 0, %s38
      %s41 = sadd.s32 1, %s25
      %s42 = scalar_select %p39, %s41, %s25
      %p43 = scmp.ge.s32.totalorder %s42, 2
      %s44 = scalar_select %p43, 0, %s42
      %s45 = ssub.s32 %s25, %s44
      %s46 = ssub.s32 %s26, %s40
      %s47 = sor.u32 %s45, %s46
      %p48 = scmp.eq.s32.totalorder %s47, 0
      %s50 = sadd.s32 %s49, 1
      %s51 = scalar_select %p48, %s49, %s50
      %p54 = pneg %p48
      %p55 = scmp.eq.s32.totalorder %s18, 1
      %p56 = por %p54, %p55
      %p57 = scmp.ne.s32.totalorder %s49, %s52
      %p58 = scmp.eq.s32.totalorder %s18, 0
      %p59 = por %p57, %p58
      %p60 = scmp.ne.s32.totalorder %s49, %s52
      %p61 = scmp.eq.s32.totalorder %s23, 1
      %p62 = por %p60, %p61
      %p63 = scmp.ne.s32.totalorder %s52, %s53
      %p64 = scmp.eq.s32.totalorder %s23, 0
      %p65 = por %p63, %p64
      %p66 = scmp.ne.s32.totalorder %s52, %s53
      %p67 = scmp.eq.s32.totalorder %s24, 1
      %p68 = por %p66, %p67
      %p70 = scmp.ne.s32.totalorder %s53, %s69
      %p71 = scmp.eq.s32.totalorder %s24, 0
      %p72 = por %p70, %p71
      %s73 = ssub.s32 %s25, %s44
      %s74 = ssub.s32 %s27, %s36
      %s75 = sor.u32 %s73, %s74
      %p76 = scmp.eq.s32.totalorder %s75, 0
      %s78 = sadd.s32 %s77, 1
      %s79 = scalar_select %p76, %s77, %s78
      %p82 = pneg %p76
      %p83 = scmp.eq.s32.totalorder %s18, 1
      %p84 = por %p82, %p83
      %p85 = scmp.ne.s32.totalorder %s77, %s80
      %p86 = scmp.eq.s32.totalorder %s18, 0
      %p87 = por %p85, %p86
      %p88 = scmp.ne.s32.totalorder %s77, %s80
      %p89 = scmp.eq.s32.totalorder %s23, 1
      %p90 = por %p88, %p89
      %p91 = scmp.ne.s32.totalorder %s80, %s81
      %p92 = scmp.eq.s32.totalorder %s23, 0
      %p93 = por %p91, %p92
      %p94 = scmp.ne.s32.totalorder %s80, %s81
      %p95 = scmp.eq.s32.totalorder %s24, 1
      %p96 = por %p94, %p95
      %p98 = scmp.ne.s32.totalorder %s81, %s97
      %p99 = scmp.eq.s32.totalorder %s24, 0
      %p100 = por %p98, %p99
      %s101 = ssub.s32 %s25, %s44
      %s102 = ssub.s32 %s27, %s36
      %s103 = sor.u32 %s101, %s102
      %p104 = scmp.eq.s32.totalorder %s103, 0
      %s106 = sadd.s32 %s105, 1
      %s107 = scalar_select %p104, %s105, %s106
      %p110 = pneg %p104
      %p111 = scmp.eq.s32.totalorder %s18, 1
      %p112 = por %p110, %p111
      %p113 = scmp.ne.s32.totalorder %s105, %s108
      %p114 = scmp.eq.s32.totalorder %s18, 0
      %p115 = por %p113, %p114
      %p116 = scmp.ne.s32.totalorder %s105, %s108
      %p117 = scmp.eq.s32.totalorder %s23, 1
      %p118 = por %p116, %p117
      %p119 = scmp.ne.s32.totalorder %s108, %s109
      %p120 = scmp.eq.s32.totalorder %s23, 0
      %p121 = por %p119, %p120
      %p122 = scmp.ne.s32.totalorder %s108, %s109
      %p123 = scmp.eq.s32.totalorder %s24, 1
      %p124 = por %p122, %p123
      %p126 = scmp.ne.s32.totalorder %s109, %s125
      %p127 = scmp.eq.s32.totalorder %s24, 0
      %p128 = por %p126, %p127
      %s129 = ssub.s32 %s25, %s44
      %s130 = ssub.s32 %s26, %s40
      %s131 = sor.u32 %s129, %s130
      %p132 = scmp.eq.s32.totalorder %s131, 0
      %s134 = sadd.s32 %s133, 1
      %s135 = scalar_select %p132, %s133, %s134
      %p138 = pneg %p132
      %p139 = scmp.eq.s32.totalorder %s18, 1
      %p140 = por %p138, %p139
      %p141 = scmp.ne.s32.totalorder %s133, %s136
      %p142 = scmp.eq.s32.totalorder %s18, 0
      %p143 = por %p141, %p142
      %p144 = scmp.ne.s32.totalorder %s133, %s136
      %p145 = scmp.eq.s32.totalorder %s23, 1
      %p146 = por %p144, %p145
      %p147 = scmp.ne.s32.totalorder %s136, %s137
      %p148 = scmp.eq.s32.totalorder %s23, 0
      %p149 = por %p147, %p148
      %p150 = scmp.ne.s32.totalorder %s136, %s137
      %p151 = scmp.eq.s32.totalorder %s24, 1
      %p152 = por %p150, %p151
      %p154 = scmp.ne.s32.totalorder %s137, %s153
      %p155 = scmp.eq.s32.totalorder %s24, 0
      %p156 = por %p154, %p155
      %p157 = scmp.le.s32.totalorder 1, %s18
      %p158 = scmp.lt.s32.totalorder %s18, 3
      %p159 = pnand %p157, %p158
      %p160 = pneg %p159
      // Predicated region
      $region9: #{tpu_custom_call.1} parent=5 // pred_check
        _
      $region10: #{tpu_custom_call.1} parent=5 // pred_check_branch
        %162 = sbr.rel (%p159) target = $region12
      $region11: #{tpu_custom_call.1} parent=5 // pred_region
        %s163 = ssub.s32 %s18, 1
      $region12: #{tpu_custom_call.1} parent=5 // pred_fallthru
        _
      %p164 = scmp.lt.s32.totalorder %s18, 2
      // Predicated region
      $region13: #{tpu_custom_call.1} parent=5 // pred_check
        %p165 = pneg %p164
      $region14: #{tpu_custom_call.1} parent=5 // pred_check_branch
        %167 = sbr.rel (%p165) target = $region16
      $region15: #{tpu_custom_call.1} parent=5 // pred_region
        // Predicated region
        $region17: #{tpu_custom_call.1} parent=15 // pred_check
          %p168 = pneg %p59
        $region18: #{tpu_custom_call.1} parent=15 // pred_check_branch
          %170 = sbr.rel (%p168) target = $region20
        $region19: #{tpu_custom_call.1} parent=15 // pred_region
          %s171 = sand.u32 %s49, 1
          %s172 = scalar_lea.sflag [#allocation6], %s171
          %s173 = sand.u32 %s49, 1
          %s174 = smul.addr %s173, 128
          %s175 = scalar_lea.vmem [#allocation5], %s174
          %s176 = smul.u32 16, %s26
          %s178 = ssub.s32 2048, 2048
          %179 = vsyncadd %s172, %s178
          %s180 = smul.addr %s25, 16
          %s181 = sadd.s32 %s176, %s180
          %s182 = smul.addr %s181, 128
          %s183 = scalar_lea.hbm %s0, %s182
          %s184 = sshll.u32 %s175, 4
          %s185 = int_to_ptr.vmem [resolvable:$true] %s184
          %190 = dma.hbm_to_vmem [thread:$0]  %s183, 2048, %s185, %s172, 128, 128, 8
        $region20: #{tpu_custom_call.1} parent=15 // pred_fallthru
          _
        // Predicated region
        $region21: #{tpu_custom_call.1} parent=15 // pred_check
          %p191 = pneg %p87
        $region22: #{tpu_custom_call.1} parent=15 // pred_check_branch
          %193 = sbr.rel (%p191) target = $region24
        $region23: #{tpu_custom_call.1} parent=15 // pred_region
          %s194 = sand.u32 %s18, 1
          %s195 = scalar_lea.sflag [#allocation9], %s194
          %s196 = sand.u32 %s77, 1
          %s197 = smul.addr %s196, 128
          %s198 = scalar_lea.vmem [#allocation8], %s197
          %s199 = smul.u32 16, %s27
          %s201 = ssub.s32 2048, 2048
          %202 = vsyncadd %s195, %s201
          %s203 = smul.addr %s25, 16
          %s204 = sadd.s32 %s199, %s203
          %s205 = smul.addr %s204, 128
          %s206 = scalar_lea.hbm %s1, %s205
          %s207 = sshll.u32 %s198, 4
          %s208 = int_to_ptr.vmem [resolvable:$true] %s207
          %213 = dma.hbm_to_vmem [thread:$0]  %s206, 2048, %s208, %s195, 128, 128, 8
        $region24: #{tpu_custom_call.1} parent=15 // pred_fallthru
          _
        // Predicated region
        $region25: #{tpu_custom_call.1} parent=15 // pred_check
          %p214 = pneg %p115
        $region26: #{tpu_custom_call.1} parent=15 // pred_check_branch
          %216 = sbr.rel (%p214) target = $region28
        $region27: #{tpu_custom_call.1} parent=15 // pred_region
          %s217 = sand.u32 %s18, 1
          %s218 = scalar_lea.sflag [#allocation9], %s217
          %s219 = sand.u32 %s105, 1
          %s220 = smul.addr %s219, 128
          %s221 = scalar_lea.vmem [#allocation10], %s220
          %s222 = smul.u32 16, %s27
          %s224 = ssub.s32 2048, 2048
          %225 = vsyncadd %s218, %s224
          %s226 = smul.addr %s25, 16
          %s227 = sadd.s32 %s222, %s226
          %s228 = smul.addr %s227, 128
          %s229 = scalar_lea.hbm %s2, %s228
          %s230 = sshll.u32 %s221, 4
          %s231 = int_to_ptr.vmem [resolvable:$true] %s230
          %236 = dma.hbm_to_vmem [thread:$0]  %s229, 2048, %s231, %s218, 128, 128, 8
        $region28: #{tpu_custom_call.1} parent=15 // pred_fallthru
          _
      $region16: #{tpu_custom_call.1} parent=5 // pred_fallthru
        _
      %p237 = scmp.le.s32.totalorder 1, %s18
      %p238 = scmp.lt.s32.totalorder %s18, 3
      %p239 = pnand %p237, %p238
      %p240 = pneg %p239
      // Predicated region
      $region29: #{tpu_custom_call.1} parent=5 // pred_check
        _
      $region30: #{tpu_custom_call.1} parent=5 // pred_check_branch
        %242 = sbr.rel (%p239) target = $region32
      $region31: #{tpu_custom_call.1} parent=5 // pred_region
        %s243 = ssub.s32 %s18, 1
        %s244 = sand.u32 %s52, 1
        %s245 = scalar_lea.sflag [#allocation6], %s244
        %s246 = sand.u32 %s52, 1
        %s247 = smul.addr %s246, 128
        %s248 = scalar_lea.vmem [#allocation5], %s247
        // Predicated region
        $region33: #{tpu_custom_call.1} parent=31 // pred_check
          %p249 = pneg %p65
        $region34: #{tpu_custom_call.1} parent=31 // pred_check_branch
          %251 = sbr.rel (%p249) target = $region36
        $region35: #{tpu_custom_call.1} parent=31 // pred_region
          %252 = dma.done %s245, 2048
        $region36: #{tpu_custom_call.1} parent=31 // pred_fallthru
          _
        %s253 = sand.u32 %s23, 1
        %s254 = scalar_lea.sflag [#allocation9], %s253
        %s255 = sand.u32 %s80, 1
        %s256 = smul.addr %s255, 128
        %s257 = scalar_lea.vmem [#allocation8], %s256
        // Predicated region
        $region37: #{tpu_custom_call.1} parent=31 // pred_check
          %p258 = pneg %p93
        $region38: #{tpu_custom_call.1} parent=31 // pred_check_branch
          %260 = sbr.rel (%p258) target = $region40
        $region39: #{tpu_custom_call.1} parent=31 // pred_region
          %261 = dma.done %s254, 2048
        $region40: #{tpu_custom_call.1} parent=31 // pred_fallthru
          _
        %s262 = sand.u32 %s23, 1
        %s263 = scalar_lea.sflag [#allocation9], %s262
        %s264 = sand.u32 %s108, 1
        %s265 = smul.addr %s264, 128
        %s266 = scalar_lea.vmem [#allocation10], %s265
        // Predicated region
        $region41: #{tpu_custom_call.1} parent=31 // pred_check
          %p267 = pneg %p121
        $region42: #{tpu_custom_call.1} parent=31 // pred_check_branch
          %269 = sbr.rel (%p267) target = $region44
        $region43: #{tpu_custom_call.1} parent=31 // pred_region
          %270 = dma.done %s263, 2048
        $region44: #{tpu_custom_call.1} parent=31 // pred_fallthru
          _
        %s271 = sand.u32 %s52, 1
        %s272 = scalar_lea.sflag [#allocation6], %s271
        %s273 = sand.u32 %s52, 1
        %s274 = smul.addr %s273, 128
        %s275 = scalar_lea.vmem [#allocation5], %s274
        %p276 = pneg %p65
        %p277 = pneg %p62
        %s278 = sand.u32 %s23, 1
        %s279 = scalar_lea.sflag [#allocation9], %s278
        %s280 = sand.u32 %s80, 1
        %s281 = smul.addr %s280, 128
        %s282 = scalar_lea.vmem [#allocation8], %s281
        %p283 = pneg %p93
        %p284 = pneg %p90
        %s285 = sand.u32 %s23, 1
        %s286 = scalar_lea.sflag [#allocation9], %s285
        %s287 = sand.u32 %s108, 1
        %s288 = smul.addr %s287, 128
        %s289 = scalar_lea.vmem [#allocation10], %s288
        %p290 = pneg %p121
        %p291 = pneg %p118
        %p292 = pneg %p149
        %p293 = pneg %p146
        %s294 = sand.u32 %s136, 1
        %s295 = scalar_lea.sflag [#allocation7], %s294
        %s296 = sand.u32 %s136, 1
        %s297 = smul.addr %s296, 128
        %s298 = scalar_lea.vmem [#allocation11], %s297
        %s299 = smul.u32 16, %s29
        %s300 = smul.u32 16, %s30
        %s301 = smul.u32 16, %s30
        %s302 = smul.u32 16, %s29
        %p303 = scmp.eq.s32.totalorder %s30, 0
        // Predicated region
        $region45: #{tpu_custom_call.1} parent=31 // pred_check
          %p304 = pneg %p303
        $region46: #{tpu_custom_call.1} parent=31 // pred_check_branch
          %306 = sbr.rel (%p304) target = $region48
        $region47: #{tpu_custom_call.1} parent=31 // pred_region
          %vm307 = vcmask 7168
          %308 = vst.msk [vmem:[#allocation2] sm:$0xff] %vm307, -inf
          %309 = vst.msk [vmem:[#allocation2 + $0x8] sm:$0xff] %vm307, -inf
          %310 = vst.msk [vmem:[#allocation2 + $0x10] sm:$0xff] %vm307, -inf
          %311 = vst.msk [vmem:[#allocation2 + $0x18] sm:$0xff] %vm307, -inf
          %312 = vst.msk [vmem:[#allocation2 + $0x20] sm:$0xff] %vm307, -inf
          %313 = vst.msk [vmem:[#allocation2 + $0x28] sm:$0xff] %vm307, -inf
          %314 = vst.msk [vmem:[#allocation2 + $0x30] sm:$0xff] %vm307, -inf
          %315 = vst.msk [vmem:[#allocation2 + $0x38] sm:$0xff] %vm307, -inf
          %316 = vst.msk [vmem:[#allocation2 + $0x40] sm:$0xff] %vm307, -inf
          %317 = vst.msk [vmem:[#allocation2 + $0x48] sm:$0xff] %vm307, -inf
          %318 = vst.msk [vmem:[#allocation2 + $0x50] sm:$0xff] %vm307, -inf
          %319 = vst.msk [vmem:[#allocation2 + $0x58] sm:$0xff] %vm307, -inf
          %320 = vst.msk [vmem:[#allocation2 + $0x60] sm:$0xff] %vm307, -inf
          %321 = vst.msk [vmem:[#allocation2 + $0x68] sm:$0xff] %vm307, -inf
          %322 = vst.msk [vmem:[#allocation2 + $0x70] sm:$0xff] %vm307, -inf
          %323 = vst.msk [vmem:[#allocation2 + $0x78] sm:$0xff] %vm307, -inf
          %324 = vst.msk [vmem:[#allocation3] sm:$0xff] %vm307, 0.0
          %325 = vst.msk [vmem:[#allocation3 + $0x8] sm:$0xff] %vm307, 0.0
          %326 = vst.msk [vmem:[#allocation3 + $0x10] sm:$0xff] %vm307, 0.0
          %327 = vst.msk [vmem:[#allocation3 + $0x18] sm:$0xff] %vm307, 0.0
          %328 = vst.msk [vmem:[#allocation3 + $0x20] sm:$0xff] %vm307, 0.0
          %329 = vst.msk [vmem:[#allocation3 + $0x28] sm:$0xff] %vm307, 0.0
          %330 = vst.msk [vmem:[#allocation3 + $0x30] sm:$0xff] %vm307, 0.0
          %331 = vst.msk [vmem:[#allocation3 + $0x38] sm:$0xff] %vm307, 0.0
          %332 = vst.msk [vmem:[#allocation3 + $0x40] sm:$0xff] %vm307, 0.0
          %333 = vst.msk [vmem:[#allocation3 + $0x48] sm:$0xff] %vm307, 0.0
          %334 = vst.msk [vmem:[#allocation3 + $0x50] sm:$0xff] %vm307, 0.0
          %335 = vst.msk [vmem:[#allocation3 + $0x58] sm:$0xff] %vm307, 0.0
          %336 = vst.msk [vmem:[#allocation3 + $0x60] sm:$0xff] %vm307, 0.0
          %337 = vst.msk [vmem:[#allocation3 + $0x68] sm:$0xff] %vm307, 0.0
          %338 = vst.msk [vmem:[#allocation3 + $0x70] sm:$0xff] %vm307, 0.0
          %339 = vst.msk [vmem:[#allocation3 + $0x78] sm:$0xff] %vm307, 0.0
          %340 = vst [vmem:[#allocation4] sm:$0xff] 0.0
          %341 = vst [vmem:[#allocation4 + $0x8] sm:$0xff] 0.0
          %342 = vst [vmem:[#allocation4 + $0x10] sm:$0xff] 0.0
          %343 = vst [vmem:[#allocation4 + $0x18] sm:$0xff] 0.0
          %344 = vst [vmem:[#allocation4 + $0x20] sm:$0xff] 0.0
          %345 = vst [vmem:[#allocation4 + $0x28] sm:$0xff] 0.0
          %346 = vst [vmem:[#allocation4 + $0x30] sm:$0xff] 0.0
          %347 = vst [vmem:[#allocation4 + $0x38] sm:$0xff] 0.0
          %348 = vst [vmem:[#allocation4 + $0x40] sm:$0xff] 0.0
          %349 = vst [vmem:[#allocation4 + $0x48] sm:$0xff] 0.0
          %350 = vst [vmem:[#allocation4 + $0x50] sm:$0xff] 0.0
          %351 = vst [vmem:[#allocation4 + $0x58] sm:$0xff] 0.0
          %352 = vst [vmem:[#allocation4 + $0x60] sm:$0xff] 0.0
          %353 = vst [vmem:[#allocation4 + $0x68] sm:$0xff] 0.0
          %354 = vst [vmem:[#allocation4 + $0x70] sm:$0xff] 0.0
          %355 = vst [vmem:[#allocation4 + $0x78] sm:$0xff] 0.0
        $region48: #{tpu_custom_call.1} parent=31 // pred_fallthru
          _
        %v356 = vld [vmem:[%s248] sm:$0xff]
        %v357 = vld [vmem:[%s248 + $0x8] sm:$0xff]
        %v358 = vld [vmem:[%s248 + $0x10] sm:$0xff]
        %v359 = vld [vmem:[%s248 + $0x18] sm:$0xff]
        %v360 = vld [vmem:[%s248 + $0x20] sm:$0xff]
        %v361 = vld [vmem:[%s248 + $0x28] sm:$0xff]
        %v362 = vld [vmem:[%s248 + $0x30] sm:$0xff]
        %v363 = vld [vmem:[%s248 + $0x38] sm:$0xff]
        %v364 = vld [vmem:[%s248 + $0x40] sm:$0xff]
        %v365 = vld [vmem:[%s248 + $0x48] sm:$0xff]
        %v366 = vld [vmem:[%s248 + $0x50] sm:$0xff]
        %v367 = vld [vmem:[%s248 + $0x58] sm:$0xff]
        %v368 = vld [vmem:[%s248 + $0x60] sm:$0xff]
        %v369 = vld [vmem:[%s248 + $0x68] sm:$0xff]
        %v370 = vld [vmem:[%s248 + $0x70] sm:$0xff]
        %v371 = vld [vmem:[%s248 + $0x78] sm:$0xff]
        %v372 = vmul.f32 %v356, 0.17677669
        %v373 = vmul.f32 %v357, 0.17677669
        %v374 = vmul.f32 %v358, 0.17677669
        %v375 = vmul.f32 %v359, 0.17677669
        %v376 = vmul.f32 %v360, 0.17677669
        %v377 = vmul.f32 %v361, 0.17677669
        %v378 = vmul.f32 %v362, 0.17677669
        %v379 = vmul.f32 %v363, 0.17677669
        %v380 = vmul.f32 %v364, 0.17677669
        %v381 = vmul.f32 %v365, 0.17677669
        %v382 = vmul.f32 %v366, 0.17677669
        %v383 = vmul.f32 %v367, 0.17677669
        %v384 = vmul.f32 %v368, 0.17677669
        %v385 = vmul.f32 %v369, 0.17677669
        %v386 = vmul.f32 %v370, 0.17677669
        %v387 = vmul.f32 %v371, 0.17677669
        %v388 = vld [vmem:[%s257] sm:$0xff]
        %v389 = vld [vmem:[%s257 + $0x8] sm:$0xff]
        %v390 = vld [vmem:[%s257 + $0x10] sm:$0xff]
        %v391 = vld [vmem:[%s257 + $0x18] sm:$0xff]
        %v392 = vld [vmem:[%s257 + $0x20] sm:$0xff]
        %v393 = vld [vmem:[%s257 + $0x28] sm:$0xff]
        %v394 = vld [vmem:[%s257 + $0x30] sm:$0xff]
        %v395 = vld [vmem:[%s257 + $0x38] sm:$0xff]
        %v396 = vld [vmem:[%s257 + $0x40] sm:$0xff]
        %v397 = vld [vmem:[%s257 + $0x48] sm:$0xff]
        %v398 = vld [vmem:[%s257 + $0x50] sm:$0xff]
        %v399 = vld [vmem:[%s257 + $0x58] sm:$0xff]
        %v400 = vld [vmem:[%s257 + $0x60] sm:$0xff]
        %v401 = vld [vmem:[%s257 + $0x68] sm:$0xff]
        %v402 = vld [vmem:[%s257 + $0x70] sm:$0xff]
        %v403 = vld [vmem:[%s257 + $0x78] sm:$0xff]
        %404 = vmatprep.subr.mxu0 0.0
        %405 = vmatpush1.xpose.msra.mxu0 %v388
        %406 = vmatprep.subr.mxu0 0.0
        %407 = vmatpush1.xpose.msra.mxu0 %v389
        %408 = vmatprep.subr.mxu0 0.0
        %409 = vmatpush1.xpose.msra.mxu0 %v390
        %410 = vmatprep.subr.mxu0 0.0
        %411 = vmatpush1.xpose.msra.mxu0 %v391
        %412 = vmatprep.subr.mxu0 0.0
        %413 = vmatpush1.xpose.msra.mxu0 %v392
        %414 = vmatprep.subr.mxu0 0.0
        %415 = vmatpush1.xpose.msra.mxu0 %v393
        %416 = vmatprep.subr.mxu0 0.0
        %417 = vmatpush1.xpose.msra.mxu0 %v394
        %418 = vmatprep.subr.mxu0 0.0
        %419 = vmatpush1.xpose.msra.mxu0 %v395
        %420 = vmatprep.subr.mxu0 0.0
        %421 = vmatpush1.xpose.msra.mxu0 %v396
        %422 = vmatprep.subr.mxu0 0.0
        %423 = vmatpush1.xpose.msra.mxu0 %v397
        %424 = vmatprep.subr.mxu0 0.0
        %425 = vmatpush1.xpose.msra.mxu0 %v398
        %426 = vmatprep.subr.mxu0 0.0
        %427 = vmatpush1.xpose.msra.mxu0 %v399
        %428 = vmatprep.subr.mxu0 0.0
        %429 = vmatpush1.xpose.msra.mxu0 %v400
        %430 = vmatprep.subr.mxu0 0.0
        %431 = vmatpush1.xpose.msra.mxu0 %v401
        %432 = vmatprep.subr.mxu0 0.0
        %433 = vmatpush1.xpose.msra.mxu0 %v402
        %434 = vmatprep.subr.mxu0 0.0
        %435 = vmatpush1.xpose.msra.mxu0 %v403
        %436 = vmatprep.subr.mxu0 0.0
        %437 = vmatpush1.xpose.msra.mxu0 0.0
        %438 = vmatprep.subr.mxu0 0.0
        %439 = vmatpush1.xpose.msra.mxu0 0.0
        %440 = vmatprep.subr.mxu0 0.0
        %441 = vmatpush1.xpose.msra.mxu0 0.0
        %442 = vmatprep.subr.mxu0 0.0
        %443 = vmatpush1.xpose.msra.mxu0 0.0
        %444 = vmatprep.subr.mxu0 0.0
        %445 = vmatpush1.xpose.msra.mxu0 0.0
        %446 = vmatprep.subr.mxu0 0.0
        %447 = vmatpush1.xpose.msra.mxu0 0.0
        %448 = vmatprep.subr.mxu0 0.0
        %449 = vmatpush1.xpose.msra.mxu0 0.0
        %450 = vmatprep.subr.mxu0 0.0
        %451 = vmatpush1.xpose.msra.mxu0 0.0
        %452 = vmatprep.subr.mxu0 0.0
        %453 = vmatpush1.xpose.msra.mxu0 0.0
        %454 = vmatprep.subr.mxu0 0.0
        %455 = vmatpush1.xpose.msra.mxu0 0.0
        %456 = vmatprep.subr.mxu0 0.0
        %457 = vmatpush1.xpose.msra.mxu0 0.0
        %458 = vmatprep.subr.mxu0 0.0
        %459 = vmatpush1.xpose.msra.mxu0 0.0
        %460 = vmatprep.subr.mxu0 0.0
        %461 = vmatpush1.xpose.msra.mxu0 0.0
        %462 = vmatprep.subr.mxu0 0.0
        %463 = vmatpush1.xpose.msra.mxu0 0.0
        %464 = vmatprep.subr.mxu0 0.0
        %465 = vmatpush1.xpose.msra.mxu0 0.0
        %466 = vmatprep.subr.mxu0 0.0
        %467 = vmatpush1.xpose.msra.mxu0 0.0
        %468 = vmatprep.mubr.f32.mxu0 0.0
        %469 = vmatmul.mubr.f32.gmra.mrb[0].mxu0 %v372
        %v470 = vpop.f32.mrb[0].mxu0
        %v471 = vadd.f32 0.0, %v470
        %v472 = vpop.f32.mrb[0].mxu0
        %473 = vmatprep.mubr.f32.mxu0 0.0
        %474 = vmatmul.mubr.f32.gmra.mrb[0].mxu0 %v373
        %v475 = vpop.f32.mrb[0].mxu0
        %v476 = vadd.f32 0.0, %v475
        %v477 = vpop.f32.mrb[0].mxu0
        %478 = vmatprep.mubr.f32.mxu0 0.0
        %479 = vmatmul.mubr.f32.gmra.mrb[0].mxu0 %v374
        %v480 = vpop.f32.mrb[0].mxu0
        %v481 = vadd.f32 0.0, %v480
        %v482 = vpop.f32.mrb[0].mxu0
        %483 = vmatprep.mubr.f32.mxu0 0.0
        %484 = vmatmul.mubr.f32.gmra.mrb[0].mxu0 %v375
        %v485 = vpop.f32.mrb[0].mxu0
        %v486 = vadd.f32 0.0, %v485
        %v487 = vpop.f32.mrb[0].mxu0
        %488 = vmatprep.mubr.f32.mxu0 0.0
        %489 = vmatmul.mubr.f32.gmra.mrb[0].mxu0 %v376
        %v490 = vpop.f32.mrb[0].mxu0
        %v491 = vadd.f32 0.0, %v490
        %v492 = vpop.f32.mrb[0].mxu0
        %493 = vmatprep.mubr.f32.mxu0 0.0
        %494 = vmatmul.mubr.f32.gmra.mrb[0].mxu0 %v377
        %v495 = vpop.f32.mrb[0].mxu0
        %v496 = vadd.f32 0.0, %v495
        %v497 = vpop.f32.mrb[0].mxu0
        %498 = vmatprep.mubr.f32.mxu0 0.0
        %499 = vmatmul.mubr.f32.gmra.mrb[0].mxu0 %v378
        %v500 = vpop.f32.mrb[0].mxu0
        %v501 = vadd.f32 0.0, %v500
        %v502 = vpop.f32.mrb[0].mxu0
        %503 = vmatprep.mubr.f32.mxu0 0.0
        %504 = vmatmul.mubr.f32.gmra.mrb[0].mxu0 %v379
        %v505 = vpop.f32.mrb[0].mxu0
        %v506 = vadd.f32 0.0, %v505
        %v507 = vpop.f32.mrb[0].mxu0
        %508 = vmatprep.mubr.f32.mxu0 0.0
        %509 = vmatmul.mubr.f32.gmra.mrb[0].mxu0 %v380
        %v510 = vpop.f32.mrb[0].mxu0
        %v511 = vadd.f32 0.0, %v510
        %v512 = vpop.f32.mrb[0].mxu0
        %513 = vmatprep.mubr.f32.mxu0 0.0
        %514 = vmatmul.mubr.f32.gmra.mrb[0].mxu0 %v381
        %v515 = vpop.f32.mrb[0].mxu0
        %v516 = vadd.f32 0.0, %v515
        %v517 = vpop.f32.mrb[0].mxu0
        %518 = vmatprep.mubr.f32.mxu0 0.0
        %519 = vmatmul.mubr.f32.gmra.mrb[0].mxu0 %v382
        %v520 = vpop.f32.mrb[0].mxu0
        %v521 = vadd.f32 0.0, %v520
        %v522 = vpop.f32.mrb[0].mxu0
        %523 = vmatprep.mubr.f32.mxu0 0.0
        %524 = vmatmul.mubr.f32.gmra.mrb[0].mxu0 %v383
        %v525 = vpop.f32.mrb[0].mxu0
        %v526 = vadd.f32 0.0, %v525
        %v527 = vpop.f32.mrb[0].mxu0
        %528 = vmatprep.mubr.f32.mxu0 0.0
        %529 = vmatmul.mubr.f32.gmra.mrb[0].mxu0 %v384
        %v530 = vpop.f32.mrb[0].mxu0
        %v531 = vadd.f32 0.0, %v530
        %v532 = vpop.f32.mrb[0].mxu0
        %533 = vmatprep.mubr.f32.mxu0 0.0
        %534 = vmatmul.mubr.f32.gmra.mrb[0].mxu0 %v385
        %v535 = vpop.f32.mrb[0].mxu0
        %v536 = vadd.f32 0.0, %v535
        %v537 = vpop.f32.mrb[0].mxu0
        %538 = vmatprep.mubr.f32.mxu0 0.0
        %539 = vmatmul.mubr.f32.gmra.mrb[0].mxu0 %v386
        %v540 = vpop.f32.mrb[0].mxu0
        %v541 = vadd.f32 0.0, %v540
        %v542 = vpop.f32.mrb[0].mxu0
        %543 = vmatprep.mubr.f32.mxu0 0.0
        %544 = vmatmul.mubr.f32.gmra.mrb[0].mxu0 %v387
        %v545 = vpop.f32.mrb[0].mxu0
        %v546 = vadd.f32 0.0, %v545
        %v547 = vpop.f32.mrb[0].mxu0
        %548 = vdwg.mxu0
        %s549 = smul.u32 %s30, 128
        %v550 = vlaneseq
        %v551 = vand.u32 %v550, 127
        %v552 = vstv %s549
        %v553 = vadd.s32 %v552, %v551
        %vm554 = vcmp.lt.s32.totalorder %v553, 8
        %v555 = vsel %vm554, %v471, -1e+30
        %v556 = vsel %vm554, %v476, -1e+30
        %v557 = vsel %vm554, %v481, -1e+30
        %v558 = vsel %vm554, %v486, -1e+30
        %v559 = vsel %vm554, %v491, -1e+30
        %v560 = vsel %vm554, %v496, -1e+30
        %v561 = vsel %vm554, %v501, -1e+30
        %v562 = vsel %vm554, %v506, -1e+30
        %v563 = vsel %vm554, %v511, -1e+30
        %v564 = vsel %vm554, %v516, -1e+30
        %v565 = vsel %vm554, %v521, -1e+30
        %v566 = vsel %vm554, %v526, -1e+30
        %v567 = vsel %vm554, %v531, -1e+30
        %v568 = vsel %vm554, %v536, -1e+30
        %v569 = vsel %vm554, %v541, -1e+30
        %v570 = vsel %vm554, %v546, -1e+30
        %v571 = vld [vmem:[#allocation2] sm:$0xff]
        %v572 = vld [vmem:[#allocation2 + $0x8] sm:$0xff]
        %v573 = vld [vmem:[#allocation2 + $0x10] sm:$0xff]
        %v574 = vld [vmem:[#allocation2 + $0x18] sm:$0xff]
        %v575 = vld [vmem:[#allocation2 + $0x20] sm:$0xff]
        %v576 = vld [vmem:[#allocation2 + $0x28] sm:$0xff]
        %v577 = vld [vmem:[#allocation2 + $0x30] sm:$0xff]
        %v578 = vld [vmem:[#allocation2 + $0x38] sm:$0xff]
        %v579 = vld [vmem:[#allocation2 + $0x40] sm:$0xff]
        %v580 = vld [vmem:[#allocation2 + $0x48] sm:$0xff]
        %v581 = vld [vmem:[#allocation2 + $0x50] sm:$0xff]
        %v582 = vld [vmem:[#allocation2 + $0x58] sm:$0xff]
        %v583 = vld [vmem:[#allocation2 + $0x60] sm:$0xff]
        %v584 = vld [vmem:[#allocation2 + $0x68] sm:$0xff]
        %v585 = vld [vmem:[#allocation2 + $0x70] sm:$0xff]
        %v586 = vld [vmem:[#allocation2 + $0x78] sm:$0xff]
        %587 = vmax.xlane.f32.xlu0 %v555
        %v588 = vpop.xlane.xlu0 %587
        %589 = vmax.xlane.f32.xlu0 %v556
        %v590 = vpop.xlane.xlu0 %589
        %591 = vmax.xlane.f32.xlu0 %v557
        %v592 = vpop.xlane.xlu0 %591
        %593 = vmax.xlane.f32.xlu0 %v558
        %v594 = vpop.xlane.xlu0 %593
        %595 = vmax.xlane.f32.xlu0 %v559
        %v596 = vpop.xlane.xlu0 %595
        %597 = vmax.xlane.f32.xlu0 %v560
        %v598 = vpop.xlane.xlu0 %597
        %599 = vmax.xlane.f32.xlu0 %v561
        %v600 = vpop.xlane.xlu0 %599
        %601 = vmax.xlane.f32.xlu0 %v562
        %v602 = vpop.xlane.xlu0 %601
        %603 = vmax.xlane.f32.xlu0 %v563
        %v604 = vpop.xlane.xlu0 %603
        %605 = vmax.xlane.f32.xlu0 %v564
        %v606 = vpop.xlane.xlu0 %605
        %607 = vmax.xlane.f32.xlu0 %v565
        %v608 = vpop.xlane.xlu0 %607
        %609 = vmax.xlane.f32.xlu0 %v566
        %v610 = vpop.xlane.xlu0 %609
        %611 = vmax.xlane.f32.xlu0 %v567
        %v612 = vpop.xlane.xlu0 %611
        %613 = vmax.xlane.f32.xlu0 %v568
        %v614 = vpop.xlane.xlu0 %613
        %615 = vmax.xlane.f32.xlu0 %v569
        %v616 = vpop.xlane.xlu0 %615
        %617 = vmax.xlane.f32.xlu0 %v570
        %v618 = vpop.xlane.xlu0 %617
        %v619 = vmax.f32 %v571, %v588
        %v620 = vmax.f32 %v572, %v590
        %v621 = vmax.f32 %v573, %v592
        %v622 = vmax.f32 %v574, %v594
        %v623 = vmax.f32 %v575, %v596
        %v624 = vmax.f32 %v576, %v598
        %v625 = vmax.f32 %v577, %v600
        %v626 = vmax.f32 %v578, %v602
        %v627 = vmax.f32 %v579, %v604
        %v628 = vmax.f32 %v580, %v606
        %v629 = vmax.f32 %v581, %v608
        %v630 = vmax.f32 %v582, %v610
        %v631 = vmax.f32 %v583, %v612
        %v632 = vmax.f32 %v584, %v614
        %v633 = vmax.f32 %v585, %v616
        %v634 = vmax.f32 %v586, %v618
        %v635 = vsub.f32 %v571, %v619
        %v636 = vsub.f32 %v572, %v620
        %v637 = vsub.f32 %v573, %v621
        %v638 = vsub.f32 %v574, %v622
        %v639 = vsub.f32 %v575, %v623
        %v640 = vsub.f32 %v576, %v624
        %v641 = vsub.f32 %v577, %v625
        %v642 = vsub.f32 %v578, %v626
        %v643 = vsub.f32 %v579, %v627
        %v644 = vsub.f32 %v580, %v628
        %v645 = vsub.f32 %v581, %v629
        %v646 = vsub.f32 %v582, %v630
        %v647 = vsub.f32 %v583, %v631
        %v648 = vsub.f32 %v584, %v632
        %v649 = vsub.f32 %v585, %v633
        %v650 = vsub.f32 %v586, %v634
        %v651 = vmul.f32 %v635, 1.442695
        %v652 = vpow.pop %v651
        %v653 = vmul.f32 %v636, 1.442695
        %v654 = vpow.pop %v653
        %v655 = vmul.f32 %v637, 1.442695
        %v656 = vpow.pop %v655
        %v657 = vmul.f32 %v638, 1.442695
        %v658 = vpow.pop %v657
        %v659 = vmul.f32 %v639, 1.442695
        %v660 = vpow.pop %v659
        %v661 = vmul.f32 %v640, 1.442695
        %v662 = vpow.pop %v661
        %v663 = vmul.f32 %v641, 1.442695
        %v664 = vpow.pop %v663
        %v665 = vmul.f32 %v642, 1.442695
        %v666 = vpow.pop %v665
        %v667 = vmul.f32 %v643, 1.442695
        %v668 = vpow.pop %v667
        %v669 = vmul.f32 %v644, 1.442695
        %v670 = vpow.pop %v669
        %v671 = vmul.f32 %v645, 1.442695
        %v672 = vpow.pop %v671
        %v673 = vmul.f32 %v646, 1.442695
        %v674 = vpow.pop %v673
        %v675 = vmul.f32 %v647, 1.442695
        %v676 = vpow.pop %v675
        %v677 = vmul.f32 %v648, 1.442695
        %v678 = vpow.pop %v677
        %v679 = vmul.f32 %v649, 1.442695
        %v680 = vpow.pop %v679
        %v681 = vmul.f32 %v650, 1.442695
        %v682 = vpow.pop %v681
        %684 = vset.pattern.permute.xlu0 0
        %685 = vperm.xlu0 %684, %v619
        %v686 = vpop.permute.xlu0 %685
        %689 = vset.pattern.permute.xlu0 0
        %690 = vperm.xlu0 %689, %v620
        %v691 = vpop.permute.xlu0 %690
        %694 = vset.pattern.permute.xlu0 0
        %695 = vperm.xlu0 %694, %v621
        %v696 = vpop.permute.xlu0 %695
        %699 = vset.pattern.permute.xlu0 0
        %700 = vperm.xlu0 %699, %v622
        %v701 = vpop.permute.xlu0 %700
        %704 = vset.pattern.permute.xlu0 0
        %705 = vperm.xlu0 %704, %v623
        %v706 = vpop.permute.xlu0 %705
        %709 = vset.pattern.permute.xlu0 0
        %710 = vperm.xlu0 %709, %v624
        %v711 = vpop.permute.xlu0 %710
        %714 = vset.pattern.permute.xlu0 0
        %715 = vperm.xlu0 %714, %v625
        %v716 = vpop.permute.xlu0 %715
        %719 = vset.pattern.permute.xlu0 0
        %720 = vperm.xlu0 %719, %v626
        %v721 = vpop.permute.xlu0 %720
        %724 = vset.pattern.permute.xlu0 0
        %725 = vperm.xlu0 %724, %v627
        %v726 = vpop.permute.xlu0 %725
        %729 = vset.pattern.permute.xlu0 0
        %730 = vperm.xlu0 %729, %v628
        %v731 = vpop.permute.xlu0 %730
        %734 = vset.pattern.permute.xlu0 0
        %735 = vperm.xlu0 %734, %v629
        %v736 = vpop.permute.xlu0 %735
        %739 = vset.pattern.permute.xlu0 0
        %740 = vperm.xlu0 %739, %v630
        %v741 = vpop.permute.xlu0 %740
        %744 = vset.pattern.permute.xlu0 0
        %745 = vperm.xlu0 %744, %v631
        %v746 = vpop.permute.xlu0 %745
        %749 = vset.pattern.permute.xlu0 0
        %750 = vperm.xlu0 %749, %v632
        %v751 = vpop.permute.xlu0 %750
        %754 = vset.pattern.permute.xlu0 0
        %755 = vperm.xlu0 %754, %v633
        %v756 = vpop.permute.xlu0 %755
        %759 = vset.pattern.permute.xlu0 0
        %760 = vperm.xlu0 %759, %v634
        %v761 = vpop.permute.xlu0 %760
        %v763 = vsub.f32 %v555, %v686
        %v764 = vsub.f32 %v556, %v691
        %v765 = vsub.f32 %v557, %v696
        %v766 = vsub.f32 %v558, %v701
        %v767 = vsub.f32 %v559, %v706
        %v768 = vsub.f32 %v560, %v711
        %v769 = vsub.f32 %v561, %v716
        %v770 = vsub.f32 %v562, %v721
        %v771 = vsub.f32 %v563, %v726
        %v772 = vsub.f32 %v564, %v731
        %v773 = vsub.f32 %v565, %v736
        %v774 = vsub.f32 %v566, %v741
        %v775 = vsub.f32 %v567, %v746
        %v776 = vsub.f32 %v568, %v751
        %v777 = vsub.f32 %v569, %v756
        %v778 = vsub.f32 %v570, %v761
        %v779 = vmul.f32 %v763, 1.442695
        %v780 = vpow.pop %v779
        %v781 = vmul.f32 %v764, 1.442695
        %v782 = vpow.pop %v781
        %v783 = vmul.f32 %v765, 1.442695
        %v784 = vpow.pop %v783
        %v785 = vmul.f32 %v766, 1.442695
        %v786 = vpow.pop %v785
        %v787 = vmul.f32 %v767, 1.442695
        %v788 = vpow.pop %v787
        %v789 = vmul.f32 %v768, 1.442695
        %v790 = vpow.pop %v789
        %v791 = vmul.f32 %v769, 1.442695
        %v792 = vpow.pop %v791
        %v793 = vmul.f32 %v770, 1.442695
        %v794 = vpow.pop %v793
        %v795 = vmul.f32 %v771, 1.442695
        %v796 = vpow.pop %v795
        %v797 = vmul.f32 %v772, 1.442695
        %v798 = vpow.pop %v797
        %v799 = vmul.f32 %v773, 1.442695
        %v800 = vpow.pop %v799
        %v801 = vmul.f32 %v774, 1.442695
        %v802 = vpow.pop %v801
        %v803 = vmul.f32 %v775, 1.442695
        %v804 = vpow.pop %v803
        %v805 = vmul.f32 %v776, 1.442695
        %v806 = vpow.pop %v805
        %v807 = vmul.f32 %v777, 1.442695
        %v808 = vpow.pop %v807
        %v809 = vmul.f32 %v778, 1.442695
        %v810 = vpow.pop %v809
        %v811 = vld [vmem:[#allocation3] sm:$0xff]
        %v812 = vld [vmem:[#allocation3 + $0x8] sm:$0xff]
        %v813 = vld [vmem:[#allocation3 + $0x10] sm:$0xff]
        %v814 = vld [vmem:[#allocation3 + $0x18] sm:$0xff]
        %v815 = vld [vmem:[#allocation3 + $0x20] sm:$0xff]
        %v816 = vld [vmem:[#allocation3 + $0x28] sm:$0xff]
        %v817 = vld [vmem:[#allocation3 + $0x30] sm:$0xff]
        %v818 = vld [vmem:[#allocation3 + $0x38] sm:$0xff]
        %v819 = vld [vmem:[#allocation3 + $0x40] sm:$0xff]
        %v820 = vld [vmem:[#allocation3 + $0x48] sm:$0xff]
        %v821 = vld [vmem:[#allocation3 + $0x50] sm:$0xff]
        %v822 = vld [vmem:[#allocation3 + $0x58] sm:$0xff]
        %v823 = vld [vmem:[#allocation3 + $0x60] sm:$0xff]
        %v824 = vld [vmem:[#allocation3 + $0x68] sm:$0xff]
        %v825 = vld [vmem:[#allocation3 + $0x70] sm:$0xff]
        %v826 = vld [vmem:[#allocation3 + $0x78] sm:$0xff]
        %v827 = vmul.f32 %v652, %v811
        %v828 = vmul.f32 %v654, %v812
        %v829 = vmul.f32 %v656, %v813
        %v830 = vmul.f32 %v658, %v814
        %v831 = vmul.f32 %v660, %v815
        %v832 = vmul.f32 %v662, %v816
        %v833 = vmul.f32 %v664, %v817
        %v834 = vmul.f32 %v666, %v818
        %v835 = vmul.f32 %v668, %v819
        %v836 = vmul.f32 %v670, %v820
        %v837 = vmul.f32 %v672, %v821
        %v838 = vmul.f32 %v674, %v822
        %v839 = vmul.f32 %v676, %v823
        %v840 = vmul.f32 %v678, %v824
        %v841 = vmul.f32 %v680, %v825
        %v842 = vmul.f32 %v682, %v826
        %843 = vadd.xlane.f32.xlu0 %v780
        %v844 = vpop.xlane.xlu0 %843
        %845 = vadd.xlane.f32.xlu0 %v782
        %v846 = vpop.xlane.xlu0 %845
        %847 = vadd.xlane.f32.xlu0 %v784
        %v848 = vpop.xlane.xlu0 %847
        %849 = vadd.xlane.f32.xlu0 %v786
        %v850 = vpop.xlane.xlu0 %849
        %851 = vadd.xlane.f32.xlu0 %v788
        %v852 = vpop.xlane.xlu0 %851
        %853 = vadd.xlane.f32.xlu0 %v790
        %v854 = vpop.xlane.xlu0 %853
        %855 = vadd.xlane.f32.xlu0 %v792
        %v856 = vpop.xlane.xlu0 %855
        %857 = vadd.xlane.f32.xlu0 %v794
        %v858 = vpop.xlane.xlu0 %857
        %859 = vadd.xlane.f32.xlu0 %v796
        %v860 = vpop.xlane.xlu0 %859
        %861 = vadd.xlane.f32.xlu0 %v798
        %v862 = vpop.xlane.xlu0 %861
        %863 = vadd.xlane.f32.xlu0 %v800
        %v864 = vpop.xlane.xlu0 %863
        %865 = vadd.xlane.f32.xlu0 %v802
        %v866 = vpop.xlane.xlu0 %865
        %867 = vadd.xlane.f32.xlu0 %v804
        %v868 = vpop.xlane.xlu0 %867
        %869 = vadd.xlane.f32.xlu0 %v806
        %v870 = vpop.xlane.xlu0 %869
        %871 = vadd.xlane.f32.xlu0 %v808
        %v872 = vpop.xlane.xlu0 %871
        %873 = vadd.xlane.f32.xlu0 %v810
        %v874 = vpop.xlane.xlu0 %873
        %v875 = vadd.f32 %v827, %v844
        %v876 = vadd.f32 %v828, %v846
        %v877 = vadd.f32 %v829, %v848
        %v878 = vadd.f32 %v830, %v850
        %v879 = vadd.f32 %v831, %v852
        %v880 = vadd.f32 %v832, %v854
        %v881 = vadd.f32 %v833, %v856
        %v882 = vadd.f32 %v834, %v858
        %v883 = vadd.f32 %v835, %v860
        %v884 = vadd.f32 %v836, %v862
        %v885 = vadd.f32 %v837, %v864
        %v886 = vadd.f32 %v838, %v866
        %v887 = vadd.f32 %v839, %v868
        %v888 = vadd.f32 %v840, %v870
        %v889 = vadd.f32 %v841, %v872
        %v890 = vadd.f32 %v842, %v874
        %vm891 = vcmask 7168
        %892 = vst.msk [vmem:[#allocation3] sm:$0xff] %vm891, %v875
        %893 = vst.msk [vmem:[#allocation3 + $0x8] sm:$0xff] %vm891, %v876
        %894 = vst.msk [vmem:[#allocation3 + $0x10] sm:$0xff] %vm891, %v877
        %895 = vst.msk [vmem:[#allocation3 + $0x18] sm:$0xff] %vm891, %v878
        %896 = vst.msk [vmem:[#allocation3 + $0x20] sm:$0xff] %vm891, %v879
        %897 = vst.msk [vmem:[#allocation3 + $0x28] sm:$0xff] %vm891, %v880
        %898 = vst.msk [vmem:[#allocation3 + $0x30] sm:$0xff] %vm891, %v881
        %899 = vst.msk [vmem:[#allocation3 + $0x38] sm:$0xff] %vm891, %v882
        %900 = vst.msk [vmem:[#allocation3 + $0x40] sm:$0xff] %vm891, %v883
        %901 = vst.msk [vmem:[#allocation3 + $0x48] sm:$0xff] %vm891, %v884
        %902 = vst.msk [vmem:[#allocation3 + $0x50] sm:$0xff] %vm891, %v885
        %903 = vst.msk [vmem:[#allocation3 + $0x58] sm:$0xff] %vm891, %v886
        %904 = vst.msk [vmem:[#allocation3 + $0x60] sm:$0xff] %vm891, %v887
        %905 = vst.msk [vmem:[#allocation3 + $0x68] sm:$0xff] %vm891, %v888
        %906 = vst.msk [vmem:[#allocation3 + $0x70] sm:$0xff] %vm891, %v889
        %907 = vst.msk [vmem:[#allocation3 + $0x78] sm:$0xff] %vm891, %v890
        %v908 = vld [vmem:[#allocation4] sm:$0xff]
        %v909 = vld [vmem:[#allocation4 + $0x8] sm:$0xff]
        %v910 = vld [vmem:[#allocation4 + $0x10] sm:$0xff]
        %v911 = vld [vmem:[#allocation4 + $0x18] sm:$0xff]
        %v912 = vld [vmem:[#allocation4 + $0x20] sm:$0xff]
        %v913 = vld [vmem:[#allocation4 + $0x28] sm:$0xff]
        %v914 = vld [vmem:[#allocation4 + $0x30] sm:$0xff]
        %v915 = vld [vmem:[#allocation4 + $0x38] sm:$0xff]
        %v916 = vld [vmem:[#allocation4 + $0x40] sm:$0xff]
        %v917 = vld [vmem:[#allocation4 + $0x48] sm:$0xff]
        %v918 = vld [vmem:[#allocation4 + $0x50] sm:$0xff]
        %v919 = vld [vmem:[#allocation4 + $0x58] sm:$0xff]
        %v920 = vld [vmem:[#allocation4 + $0x60] sm:$0xff]
        %v921 = vld [vmem:[#allocation4 + $0x68] sm:$0xff]
        %v922 = vld [vmem:[#allocation4 + $0x70] sm:$0xff]
        %v923 = vld [vmem:[#allocation4 + $0x78] sm:$0xff]
        %925 = vset.pattern.permute.xlu0 0
        %926 = vperm.xlu0 %925, %v652
        %v927 = vpop.permute.xlu0 %926
        %930 = vset.pattern.permute.xlu0 0
        %931 = vperm.xlu0 %930, %v654
        %v932 = vpop.permute.xlu0 %931
        %935 = vset.pattern.permute.xlu0 0
        %936 = vperm.xlu0 %935, %v656
        %v937 = vpop.permute.xlu0 %936
        %940 = vset.pattern.permute.xlu0 0
        %941 = vperm.xlu0 %940, %v658
        %v942 = vpop.permute.xlu0 %941
        %945 = vset.pattern.permute.xlu0 0
        %946 = vperm.xlu0 %945, %v660
        %v947 = vpop.permute.xlu0 %946
        %950 = vset.pattern.permute.xlu0 0
        %951 = vperm.xlu0 %950, %v662
        %v952 = vpop.permute.xlu0 %951
        %955 = vset.pattern.permute.xlu0 0
        %956 = vperm.xlu0 %955, %v664
        %v957 = vpop.permute.xlu0 %956
        %960 = vset.pattern.permute.xlu0 0
        %961 = vperm.xlu0 %960, %v666
        %v962 = vpop.permute.xlu0 %961
        %965 = vset.pattern.permute.xlu0 0
        %966 = vperm.xlu0 %965, %v668
        %v967 = vpop.permute.xlu0 %966
        %970 = vset.pattern.permute.xlu0 0
        %971 = vperm.xlu0 %970, %v670
        %v972 = vpop.permute.xlu0 %971
        %975 = vset.pattern.permute.xlu0 0
        %976 = vperm.xlu0 %975, %v672
        %v977 = vpop.permute.xlu0 %976
        %980 = vset.pattern.permute.xlu0 0
        %981 = vperm.xlu0 %980, %v674
        %v982 = vpop.permute.xlu0 %981
        %985 = vset.pattern.permute.xlu0 0
        %986 = vperm.xlu0 %985, %v676
        %v987 = vpop.permute.xlu0 %986
        %990 = vset.pattern.permute.xlu0 0
        %991 = vperm.xlu0 %990, %v678
        %v992 = vpop.permute.xlu0 %991
        %995 = vset.pattern.permute.xlu0 0
        %996 = vperm.xlu0 %995, %v680
        %v997 = vpop.permute.xlu0 %996
        %1000 = vset.pattern.permute.xlu0 0
        %1001 = vperm.xlu0 %1000, %v682
        %v1002 = vpop.permute.xlu0 %1001
        %v1004 = vmul.f32 %v927, %v908
        %v1005 = vmul.f32 %v932, %v909
        %v1006 = vmul.f32 %v937, %v910
        %v1007 = vmul.f32 %v942, %v911
        %v1008 = vmul.f32 %v947, %v912
        %v1009 = vmul.f32 %v952, %v913
        %v1010 = vmul.f32 %v957, %v914
        %v1011 = vmul.f32 %v962, %v915
        %v1012 = vmul.f32 %v967, %v916
        %v1013 = vmul.f32 %v972, %v917
        %v1014 = vmul.f32 %v977, %v918
        %v1015 = vmul.f32 %v982, %v919
        %v1016 = vmul.f32 %v987, %v920
        %v1017 = vmul.f32 %v992, %v921
        %v1018 = vmul.f32 %v997, %v922
        %v1019 = vmul.f32 %v1002, %v923
        %v1020 = vld [vmem:[%s266] sm:$0xff]
        %v1021 = vld [vmem:[%s266 + $0x8] sm:$0xff]
        %v1022 = vld [vmem:[%s266 + $0x10] sm:$0xff]
        %v1023 = vld [vmem:[%s266 + $0x18] sm:$0xff]
        %v1024 = vld [vmem:[%s266 + $0x20] sm:$0xff]
        %v1025 = vld [vmem:[%s266 + $0x28] sm:$0xff]
        %v1026 = vld [vmem:[%s266 + $0x30] sm:$0xff]
        %v1027 = vld [vmem:[%s266 + $0x38] sm:$0xff]
        %v1028 = vld [vmem:[%s266 + $0x40] sm:$0xff]
        %v1029 = vld [vmem:[%s266 + $0x48] sm:$0xff]
        %v1030 = vld [vmem:[%s266 + $0x50] sm:$0xff]
        %v1031 = vld [vmem:[%s266 + $0x58] sm:$0xff]
        %v1032 = vld [vmem:[%s266 + $0x60] sm:$0xff]
        %v1033 = vld [vmem:[%s266 + $0x68] sm:$0xff]
        %v1034 = vld [vmem:[%s266 + $0x70] sm:$0xff]
        %v1035 = vld [vmem:[%s266 + $0x78] sm:$0xff]
        %1036 = vmatprep.subr.mxu0 0.0
        %1037 = vmatpush1.msra.mxu0 %v1020
        %1038 = vmatprep.subr.mxu0 0.0
        %1039 = vmatpush1.msra.mxu0 %v1021
        %1040 = vmatprep.subr.mxu0 0.0
        %1041 = vmatpush1.msra.mxu0 %v1022
        %1042 = vmatprep.subr.mxu0 0.0
        %1043 = vmatpush1.msra.mxu0 %v1023
        %1044 = vmatprep.subr.mxu0 0.0
        %1045 = vmatpush1.msra.mxu0 %v1024
        %1046 = vmatprep.subr.mxu0 0.0
        %1047 = vmatpush1.msra.mxu0 %v1025
        %1048 = vmatprep.subr.mxu0 0.0
        %1049 = vmatpush1.msra.mxu0 %v1026
        %1050 = vmatprep.subr.mxu0 0.0
        %1051 = vmatpush1.msra.mxu0 %v1027
        %1052 = vmatprep.subr.mxu0 0.0
        %1053 = vmatpush1.msra.mxu0 %v1028
        %1054 = vmatprep.subr.mxu0 0.0
        %1055 = vmatpush1.msra.mxu0 %v1029
        %1056 = vmatprep.subr.mxu0 0.0
        %1057 = vmatpush1.msra.mxu0 %v1030
        %1058 = vmatprep.subr.mxu0 0.0
        %1059 = vmatpush1.msra.mxu0 %v1031
        %1060 = vmatprep.subr.mxu0 0.0
        %1061 = vmatpush1.msra.mxu0 %v1032
        %1062 = vmatprep.subr.mxu0 0.0
        %1063 = vmatpush1.msra.mxu0 %v1033
        %1064 = vmatprep.subr.mxu0 0.0
        %1065 = vmatpush1.msra.mxu0 %v1034
        %1066 = vmatprep.subr.mxu0 0.0
        %1067 = vmatpush1.msra.mxu0 %v1035
        %1068 = vmatprep.subr.mxu0 0.0
        %1069 = vmatpush1.msra.mxu0 0.0
        %1070 = vmatprep.subr.mxu0 0.0
        %1071 = vmatpush1.msra.mxu0 0.0
        %1072 = vmatprep.subr.mxu0 0.0
        %1073 = vmatpush1.msra.mxu0 0.0
        %1074 = vmatprep.subr.mxu0 0.0
        %1075 = vmatpush1.msra.mxu0 0.0
        %1076 = vmatprep.subr.mxu0 0.0
        %1077 = vmatpush1.msra.mxu0 0.0
        %1078 = vmatprep.subr.mxu0 0.0
        %1079 = vmatpush1.msra.mxu0 0.0
        %1080 = vmatprep.subr.mxu0 0.0
        %1081 = vmatpush1.msra.mxu0 0.0
        %1082 = vmatprep.subr.mxu0 0.0
        %1083 = vmatpush1.msra.mxu0 0.0
        %1084 = vmatprep.subr.mxu0 0.0
        %1085 = vmatpush1.msra.mxu0 0.0
        %1086 = vmatprep.subr.mxu0 0.0
        %1087 = vmatpush1.msra.mxu0 0.0
        %1088 = vmatprep.subr.mxu0 0.0
        %1089 = vmatpush1.msra.mxu0 0.0
        %1090 = vmatprep.subr.mxu0 0.0
        %1091 = vmatpush1.msra.mxu0 0.0
        %1092 = vmatprep.subr.mxu0 0.0
        %1093 = vmatpush1.msra.mxu0 0.0
        %1094 = vmatprep.subr.mxu0 0.0
        %1095 = vmatpush1.msra.mxu0 0.0
        %1096 = vmatprep.subr.mxu0 0.0
        %1097 = vmatpush1.msra.mxu0 0.0
        %1098 = vmatprep.subr.mxu0 0.0
        %1099 = vmatpush1.msra.mxu0 0.0
        %1100 = vmatprep.mubr.f32.mxu0 0.0
        %1101 = vmatmul.mubr.f32.gmra.mrb[0].mxu0 %v780
        %v1102 = vpop.f32.mrb[0].mxu0
        %v1103 = vadd.f32 0.0, %v1102
        %v1104 = vpop.f32.mrb[0].mxu0
        %1105 = vmatprep.mubr.f32.mxu0 0.0
        %1106 = vmatmul.mubr.f32.gmra.mrb[0].mxu0 %v782
        %v1107 = vpop.f32.mrb[0].mxu0
        %v1108 = vadd.f32 0.0, %v1107
        %v1109 = vpop.f32.mrb[0].mxu0
        %1110 = vmatprep.mubr.f32.mxu0 0.0
        %1111 = vmatmul.mubr.f32.gmra.mrb[0].mxu0 %v784
        %v1112 = vpop.f32.mrb[0].mxu0
        %v1113 = vadd.f32 0.0, %v1112
        %v1114 = vpop.f32.mrb[0].mxu0
        %1115 = vmatprep.mubr.f32.mxu0 0.0
        %1116 = vmatmul.mubr.f32.gmra.mrb[0].mxu0 %v786
        %v1117 = vpop.f32.mrb[0].mxu0
        %v1118 = vadd.f32 0.0, %v1117
        %v1119 = vpop.f32.mrb[0].mxu0
        %1120 = vmatprep.mubr.f32.mxu0 0.0
        %1121 = vmatmul.mubr.f32.gmra.mrb[0].mxu0 %v788
        %v1122 = vpop.f32.mrb[0].mxu0
        %v1123 = vadd.f32 0.0, %v1122
        %v1124 = vpop.f32.mrb[0].mxu0
        %1125 = vmatprep.mubr.f32.mxu0 0.0
        %1126 = vmatmul.mubr.f32.gmra.mrb[0].mxu0 %v790
        %v1127 = vpop.f32.mrb[0].mxu0
        %v1128 = vadd.f32 0.0, %v1127
        %v1129 = vpop.f32.mrb[0].mxu0
        %1130 = vmatprep.mubr.f32.mxu0 0.0
        %1131 = vmatmul.mubr.f32.gmra.mrb[0].mxu0 %v792
        %v1132 = vpop.f32.mrb[0].mxu0
        %v1133 = vadd.f32 0.0, %v1132
        %v1134 = vpop.f32.mrb[0].mxu0
        %1135 = vmatprep.mubr.f32.mxu0 0.0
        %1136 = vmatmul.mubr.f32.gmra.mrb[0].mxu0 %v794
        %v1137 = vpop.f32.mrb[0].mxu0
        %v1138 = vadd.f32 0.0, %v1137
        %v1139 = vpop.f32.mrb[0].mxu0
        %1140 = vmatprep.mubr.f32.mxu0 0.0
        %1141 = vmatmul.mubr.f32.gmra.mrb[0].mxu0 %v796
        %v1142 = vpop.f32.mrb[0].mxu0
        %v1143 = vadd.f32 0.0, %v1142
        %v1144 = vpop.f32.mrb[0].mxu0
        %1145 = vmatprep.mubr.f32.mxu0 0.0
        %1146 = vmatmul.mubr.f32.gmra.mrb[0].mxu0 %v798
        %v1147 = vpop.f32.mrb[0].mxu0
        %v1148 = vadd.f32 0.0, %v1147
        %v1149 = vpop.f32.mrb[0].mxu0
        %1150 = vmatprep.mubr.f32.mxu0 0.0
        %1151 = vmatmul.mubr.f32.gmra.mrb[0].mxu0 %v800
        %v1152 = vpop.f32.mrb[0].mxu0
        %v1153 = vadd.f32 0.0, %v1152
        %v1154 = vpop.f32.mrb[0].mxu0
        %1155 = vmatprep.mubr.f32.mxu0 0.0
        %1156 = vmatmul.mubr.f32.gmra.mrb[0].mxu0 %v802
        %v1157 = vpop.f32.mrb[0].mxu0
        %v1158 = vadd.f32 0.0, %v1157
        %v1159 = vpop.f32.mrb[0].mxu0
        %1160 = vmatprep.mubr.f32.mxu0 0.0
        %1161 = vmatmul.mubr.f32.gmra.mrb[0].mxu0 %v804
        %v1162 = vpop.f32.mrb[0].mxu0
        %v1163 = vadd.f32 0.0, %v1162
        %v1164 = vpop.f32.mrb[0].mxu0
        %1165 = vmatprep.mubr.f32.mxu0 0.0
        %1166 = vmatmul.mubr.f32.gmra.mrb[0].mxu0 %v806
        %v1167 = vpop.f32.mrb[0].mxu0
        %v1168 = vadd.f32 0.0, %v1167
        %v1169 = vpop.f32.mrb[0].mxu0
        %1170 = vmatprep.mubr.f32.mxu0 0.0
        %1171 = vmatmul.mubr.f32.gmra.mrb[0].mxu0 %v808
        %v1172 = vpop.f32.mrb[0].mxu0
        %v1173 = vadd.f32 0.0, %v1172
        %v1174 = vpop.f32.mrb[0].mxu0
        %1175 = vmatprep.mubr.f32.mxu0 0.0
        %1176 = vmatmul.mubr.f32.gmra.mrb[0].mxu0 %v810
        %v1177 = vpop.f32.mrb[0].mxu0
        %v1178 = vadd.f32 0.0, %v1177
        %v1179 = vpop.f32.mrb[0].mxu0
        %1180 = vdwg.mxu0
        %v1181 = vadd.f32 %v1004, %v1103
        %v1182 = vadd.f32 %v1005, %v1108
        %v1183 = vadd.f32 %v1006, %v1113
        %v1184 = vadd.f32 %v1007, %v1118
        %v1185 = vadd.f32 %v1008, %v1123
        %v1186 = vadd.f32 %v1009, %v1128
        %v1187 = vadd.f32 %v1010, %v1133
        %v1188 = vadd.f32 %v1011, %v1138
        %v1189 = vadd.f32 %v1012, %v1143
        %v1190 = vadd.f32 %v1013, %v1148
        %v1191 = vadd.f32 %v1014, %v1153
        %v1192 = vadd.f32 %v1015, %v1158
        %v1193 = vadd.f32 %v1016, %v1163
        %v1194 = vadd.f32 %v1017, %v1168
        %v1195 = vadd.f32 %v1018, %v1173
        %v1196 = vadd.f32 %v1019, %v1178
        %1197 = vst [vmem:[#allocation4] sm:$0xff] %v1181
        %1198 = vst [vmem:[#allocation4 + $0x8] sm:$0xff] %v1182
        %1199 = vst [vmem:[#allocation4 + $0x10] sm:$0xff] %v1183
        %1200 = vst [vmem:[#allocation4 + $0x18] sm:$0xff] %v1184
        %1201 = vst [vmem:[#allocation4 + $0x20] sm:$0xff] %v1185
        %1202 = vst [vmem:[#allocation4 + $0x28] sm:$0xff] %v1186
        %1203 = vst [vmem:[#allocation4 + $0x30] sm:$0xff] %v1187
        %1204 = vst [vmem:[#allocation4 + $0x38] sm:$0xff] %v1188
        %1205 = vst [vmem:[#allocation4 + $0x40] sm:$0xff] %v1189
        %1206 = vst [vmem:[#allocation4 + $0x48] sm:$0xff] %v1190
        %1207 = vst [vmem:[#allocation4 + $0x50] sm:$0xff] %v1191
        %1208 = vst [vmem:[#allocation4 + $0x58] sm:$0xff] %v1192
        %1209 = vst [vmem:[#allocation4 + $0x60] sm:$0xff] %v1193
        %1210 = vst [vmem:[#allocation4 + $0x68] sm:$0xff] %v1194
        %1211 = vst [vmem:[#allocation4 + $0x70] sm:$0xff] %v1195
        %1212 = vst [vmem:[#allocation4 + $0x78] sm:$0xff] %v1196
        %1213 = vst.msk [vmem:[#allocation2] sm:$0xff] %vm891, %v619
        %1214 = vst.msk [vmem:[#allocation2 + $0x8] sm:$0xff] %vm891, %v620
        %1215 = vst.msk [vmem:[#allocation2 + $0x10] sm:$0xff] %vm891, %v621
        %1216 = vst.msk [vmem:[#allocation2 + $0x18] sm:$0xff] %vm891, %v622
        %1217 = vst.msk [vmem:[#allocation2 + $0x20] sm:$0xff] %vm891, %v623
        %1218 = vst.msk [vmem:[#allocation2 + $0x28] sm:$0xff] %vm891, %v624
        %1219 = vst.msk [vmem:[#allocation2 + $0x30] sm:$0xff] %vm891, %v625
        %1220 = vst.msk [vmem:[#allocation2 + $0x38] sm:$0xff] %vm891, %v626
        %1221 = vst.msk [vmem:[#allocation2 + $0x40] sm:$0xff] %vm891, %v627
        %1222 = vst.msk [vmem:[#allocation2 + $0x48] sm:$0xff] %vm891, %v628
        %1223 = vst.msk [vmem:[#allocation2 + $0x50] sm:$0xff] %vm891, %v629
        %1224 = vst.msk [vmem:[#allocation2 + $0x58] sm:$0xff] %vm891, %v630
        %1225 = vst.msk [vmem:[#allocation2 + $0x60] sm:$0xff] %vm891, %v631
        %1226 = vst.msk [vmem:[#allocation2 + $0x68] sm:$0xff] %vm891, %v632
        %1227 = vst.msk [vmem:[#allocation2 + $0x70] sm:$0xff] %vm891, %v633
        %1228 = vst.msk [vmem:[#allocation2 + $0x78] sm:$0xff] %vm891, %v634
        // Predicated region
        $region49: #{tpu_custom_call.1} parent=31 // pred_check
          %p1229 = pneg %p303
        $region50: #{tpu_custom_call.1} parent=31 // pred_check_branch
          %1231 = sbr.rel (%p1229) target = $region52
        $region51: #{tpu_custom_call.1} parent=31 // pred_region
          %v1232 = vld [vmem:[#allocation3] sm:$0xff]
          %v1233 = vld [vmem:[#allocation3 + $0x8] sm:$0xff]
          %v1234 = vld [vmem:[#allocation3 + $0x10] sm:$0xff]
          %v1235 = vld [vmem:[#allocation3 + $0x18] sm:$0xff]
          %v1236 = vld [vmem:[#allocation3 + $0x20] sm:$0xff]
          %v1237 = vld [vmem:[#allocation3 + $0x28] sm:$0xff]
          %v1238 = vld [vmem:[#allocation3 + $0x30] sm:$0xff]
          %v1239 = vld [vmem:[#allocation3 + $0x38] sm:$0xff]
          %v1240 = vld [vmem:[#allocation3 + $0x40] sm:$0xff]
          %v1241 = vld [vmem:[#allocation3 + $0x48] sm:$0xff]
          %v1242 = vld [vmem:[#allocation3 + $0x50] sm:$0xff]
          %v1243 = vld [vmem:[#allocation3 + $0x58] sm:$0xff]
          %v1244 = vld [vmem:[#allocation3 + $0x60] sm:$0xff]
          %v1245 = vld [vmem:[#allocation3 + $0x68] sm:$0xff]
          %v1246 = vld [vmem:[#allocation3 + $0x70] sm:$0xff]
          %v1247 = vld [vmem:[#allocation3 + $0x78] sm:$0xff]
          %v1248 = vrcp.pop %v1232
          %v1249 = vrcp.pop %v1233
          %v1250 = vrcp.pop %v1234
          %v1251 = vrcp.pop %v1235
          %v1252 = vrcp.pop %v1236
          %v1253 = vrcp.pop %v1237
          %v1254 = vrcp.pop %v1238
          %v1255 = vrcp.pop %v1239
          %v1256 = vrcp.pop %v1240
          %v1257 = vrcp.pop %v1241
          %v1258 = vrcp.pop %v1242
          %v1259 = vrcp.pop %v1243
          %v1260 = vrcp.pop %v1244
          %v1261 = vrcp.pop %v1245
          %v1262 = vrcp.pop %v1246
          %v1263 = vrcp.pop %v1247
          %v1264 = vld [vmem:[#allocation4] sm:$0xff]
          %v1265 = vld [vmem:[#allocation4 + $0x8] sm:$0xff]
          %v1266 = vld [vmem:[#allocation4 + $0x10] sm:$0xff]
          %v1267 = vld [vmem:[#allocation4 + $0x18] sm:$0xff]
          %v1268 = vld [vmem:[#allocation4 + $0x20] sm:$0xff]
          %v1269 = vld [vmem:[#allocation4 + $0x28] sm:$0xff]
          %v1270 = vld [vmem:[#allocation4 + $0x30] sm:$0xff]
          %v1271 = vld [vmem:[#allocation4 + $0x38] sm:$0xff]
          %v1272 = vld [vmem:[#allocation4 + $0x40] sm:$0xff]
          %v1273 = vld [vmem:[#allocation4 + $0x48] sm:$0xff]
          %v1274 = vld [vmem:[#allocation4 + $0x50] sm:$0xff]
          %v1275 = vld [vmem:[#allocation4 + $0x58] sm:$0xff]
          %v1276 = vld [vmem:[#allocation4 + $0x60] sm:$0xff]
          %v1277 = vld [vmem:[#allocation4 + $0x68] sm:$0xff]
          %v1278 = vld [vmem:[#allocation4 + $0x70] sm:$0xff]
          %v1279 = vld [vmem:[#allocation4 + $0x78] sm:$0xff]
          %1281 = vset.pattern.permute.xlu0 0
          %1282 = vperm.xlu0 %1281, %v1248
          %v1283 = vpop.permute.xlu0 %1282
          %1286 = vset.pattern.permute.xlu0 0
          %1287 = vperm.xlu0 %1286, %v1249
          %v1288 = vpop.permute.xlu0 %1287
          %1291 = vset.pattern.permute.xlu0 0
          %1292 = vperm.xlu0 %1291, %v1250
          %v1293 = vpop.permute.xlu0 %1292
          %1296 = vset.pattern.permute.xlu0 0
          %1297 = vperm.xlu0 %1296, %v1251
          %v1298 = vpop.permute.xlu0 %1297
          %1301 = vset.pattern.permute.xlu0 0
          %1302 = vperm.xlu0 %1301, %v1252
          %v1303 = vpop.permute.xlu0 %1302
          %1306 = vset.pattern.permute.xlu0 0
          %1307 = vperm.xlu0 %1306, %v1253
          %v1308 = vpop.permute.xlu0 %1307
          %1311 = vset.pattern.permute.xlu0 0
          %1312 = vperm.xlu0 %1311, %v1254
          %v1313 = vpop.permute.xlu0 %1312
          %1316 = vset.pattern.permute.xlu0 0
          %1317 = vperm.xlu0 %1316, %v1255
          %v1318 = vpop.permute.xlu0 %1317
          %1321 = vset.pattern.permute.xlu0 0
          %1322 = vperm.xlu0 %1321, %v1256
          %v1323 = vpop.permute.xlu0 %1322
          %1326 = vset.pattern.permute.xlu0 0
          %1327 = vperm.xlu0 %1326, %v1257
          %v1328 = vpop.permute.xlu0 %1327
          %1331 = vset.pattern.permute.xlu0 0
          %1332 = vperm.xlu0 %1331, %v1258
          %v1333 = vpop.permute.xlu0 %1332
          %1336 = vset.pattern.permute.xlu0 0
          %1337 = vperm.xlu0 %1336, %v1259
          %v1338 = vpop.permute.xlu0 %1337
          %1341 = vset.pattern.permute.xlu0 0
          %1342 = vperm.xlu0 %1341, %v1260
          %v1343 = vpop.permute.xlu0 %1342
          %1346 = vset.pattern.permute.xlu0 0
          %1347 = vperm.xlu0 %1346, %v1261
          %v1348 = vpop.permute.xlu0 %1347
          %1351 = vset.pattern.permute.xlu0 0
          %1352 = vperm.xlu0 %1351, %v1262
          %v1353 = vpop.permute.xlu0 %1352
          %1356 = vset.pattern.permute.xlu0 0
          %1357 = vperm.xlu0 %1356, %v1263
          %v1358 = vpop.permute.xlu0 %1357
          %v1360 = vmul.f32 %v1264, %v1283
          %v1361 = vmul.f32 %v1265, %v1288
          %v1362 = vmul.f32 %v1266, %v1293
          %v1363 = vmul.f32 %v1267, %v1298
          %v1364 = vmul.f32 %v1268, %v1303
          %v1365 = vmul.f32 %v1269, %v1308
          %v1366 = vmul.f32 %v1270, %v1313
          %v1367 = vmul.f32 %v1271, %v1318
          %v1368 = vmul.f32 %v1272, %v1323
          %v1369 = vmul.f32 %v1273, %v1328
          %v1370 = vmul.f32 %v1274, %v1333
          %v1371 = vmul.f32 %v1275, %v1338
          %v1372 = vmul.f32 %v1276, %v1343
          %v1373 = vmul.f32 %v1277, %v1348
          %v1374 = vmul.f32 %v1278, %v1353
          %v1375 = vmul.f32 %v1279, %v1358
          %1376 = vst [vmem:[%s298] sm:$0xff] %v1360
          %1377 = vst [vmem:[%s298 + $0x8] sm:$0xff] %v1361
          %1378 = vst [vmem:[%s298 + $0x10] sm:$0xff] %v1362
          %1379 = vst [vmem:[%s298 + $0x18] sm:$0xff] %v1363
          %1380 = vst [vmem:[%s298 + $0x20] sm:$0xff] %v1364
          %1381 = vst [vmem:[%s298 + $0x28] sm:$0xff] %v1365
          %1382 = vst [vmem:[%s298 + $0x30] sm:$0xff] %v1366
          %1383 = vst [vmem:[%s298 + $0x38] sm:$0xff] %v1367
          %1384 = vst [vmem:[%s298 + $0x40] sm:$0xff] %v1368
          %1385 = vst [vmem:[%s298 + $0x48] sm:$0xff] %v1369
          %1386 = vst [vmem:[%s298 + $0x50] sm:$0xff] %v1370
          %1387 = vst [vmem:[%s298 + $0x58] sm:$0xff] %v1371
          %1388 = vst [vmem:[%s298 + $0x60] sm:$0xff] %v1372
          %1389 = vst [vmem:[%s298 + $0x68] sm:$0xff] %v1373
          %1390 = vst [vmem:[%s298 + $0x70] sm:$0xff] %v1374
          %1391 = vst [vmem:[%s298 + $0x78] sm:$0xff] %v1375
        $region52: #{tpu_custom_call.1} parent=31 // pred_fallthru
          _
        %s1392 = sand.u32 %s136, 1
        %s1393 = scalar_lea.sflag [#allocation7], %s1392
        %s1394 = sand.u32 %s136, 1
        %s1395 = smul.addr %s1394, 128
        %s1396 = scalar_lea.vmem [#allocation11], %s1395
        // Predicated region
        $region53: #{tpu_custom_call.1} parent=31 // pred_check
          %p1397 = pneg %p146
        $region54: #{tpu_custom_call.1} parent=31 // pred_check_branch
          %1399 = sbr.rel (%p1397) target = $region56
        $region55: #{tpu_custom_call.1} parent=31 // pred_region
          %s1400 = smul.u32 16, %s29
          %s1402 = ssub.s32 2048, 2048
          %1403 = vsyncadd %s1393, %s1402
          %s1404 = smul.addr %s28, 16
          %s1405 = sadd.s32 %s1400, %s1404
          %s1406 = smul.addr %s1405, 128
          %s1407 = scalar_lea.hbm %s3, %s1406
          %s1408 = sshll.u32 %s1396, 4
          %s1409 = int_to_ptr.vmem [resolvable:$true] %s1408
          %1414 = dma.vmem_to_hbm [thread:$0]  %s1409, 2048, %s1407, %s1393, 128, 128, 8
        $region56: #{tpu_custom_call.1} parent=31 // pred_fallthru
          _
      $region32: #{tpu_custom_call.1} parent=5 // pred_fallthru
        _
      %p1415 = scmp.le.s32.totalorder 2, %s18
      // Predicated region
      $region57: #{tpu_custom_call.1} parent=5 // pred_check
        %p1416 = pneg %p1415
      $region58: #{tpu_custom_call.1} parent=5 // pred_check_branch
        %1418 = sbr.rel (%p1416) target = $region60
      $region59: #{tpu_custom_call.1} parent=5 // pred_region
        %s1419 = ssub.s32 %s18, 2
        // Predicated region
        $region61: #{tpu_custom_call.1} parent=59 // pred_check
          %p1420 = pneg %p152
        $region62: #{tpu_custom_call.1} parent=59 // pred_check_branch
          %1422 = sbr.rel (%p1420) target = $region64
        $region63: #{tpu_custom_call.1} parent=59 // pred_region
          %s1423 = sand.u32 %s137, 1
          %s1424 = scalar_lea.sflag [#allocation7], %s1423
          %s1425 = sand.u32 %s137, 1
          %s1426 = smul.addr %s1425, 128
          %s1427 = scalar_lea.vmem [#allocation11], %s1426
          %1428 = dma.done %s1424, 2048
        $region64: #{tpu_custom_call.1} parent=59 // pred_fallthru
          _
      $region60: #{tpu_custom_call.1} parent=5 // pred_fallthru
        _
    $region6: #{tpu_custom_call.1} parent=1 // loop_footer
      %s22 = sadd.s32 1, %s18
    $region7: #{tpu_custom_call.1} parent=1 // loop_footer_branch
      %17 = sbr.rel target = $region3
    $region8: #{tpu_custom_call.1} parent=1 // loop_exit
      _
    %1429 = vsyncpa [#allocation6], 1
    %s1430 = scalar_lea.sflag [#allocation6], 1
    %1431 = vsyncpa %s1430, 1
    %1432 = vsyncpa [#allocation9], 1
    %s1433 = scalar_lea.sflag [#allocation9], 1
    %1434 = vsyncpa %s1433, 1
    %1435 = vsyncpa [#allocation7], 1
    %s1436 = scalar_lea.sflag [#allocation7], 1
    %1437 = vsyncpa %s1436, 1

</llo_original>
